<compile_context>
chip_gen: v7x
topology: tpu7x:2x2x1
jax: 0.10.0
libtpu: 0.0.40
codegen_flags: <defaults>
</compile_context>

<pallas_src>
import functools

import jax
import jax.numpy as jnp
from jax.experimental import pallas as pl
from jax.experimental.pallas import tpu as pltpu


def _round_up(x, m):
    return ((x + m - 1) // m) * m


# ----------------------------------------------------------------------------- kernels


def _ae_fused_kernel(x_ref,
                     w1_ref, w2_ref, w3_ref, w4_ref,
                     bh_ref, b4_ref,
                     o_ref):
    """One batch tile through the whole AE: 4x (bf16 MXU matmul + f32 bias + ReLU)."""
    h = jnp.dot(x_ref[...], w1_ref[...], preferred_element_type=jnp.float32)
    h = jnp.maximum(h + bh_ref[0:1, :], 0.0)

    h = jnp.dot(h.astype(jnp.bfloat16), w2_ref[...], preferred_element_type=jnp.float32)
    h = jnp.maximum(h + bh_ref[1:2, :], 0.0)

    h = jnp.dot(h.astype(jnp.bfloat16), w3_ref[...], preferred_element_type=jnp.float32)
    h = jnp.maximum(h + bh_ref[2:3, :], 0.0)

    h = jnp.dot(h.astype(jnp.bfloat16), w4_ref[...], preferred_element_type=jnp.float32)
    h = jnp.maximum(h + b4_ref[...], 0.0)

    o_ref[...] = h.astype(o_ref.dtype)


def _linear_relu_kernel(x_ref, w_ref, b_ref, o_ref, acc_ref):
    """Canonical tiled matmul + bias + ReLU (streamed-weights fallback path)."""
    @pl.when(pl.program_id(2) == 0)
    def _():
        acc_ref[...] = jnp.zeros_like(acc_ref)

    acc_ref[...] += jnp.dot(x_ref[...], w_ref[...], preferred_element_type=jnp.float32)

    @pl.when(pl.program_id(2) == pl.num_programs(2) - 1)
    def _():
        o_ref[...] = jnp.maximum(acc_ref[...] + b_ref[...], 0.0).astype(o_ref.dtype)


# ------------------------------------------------------------------------ sizing logic


def _vmem_limit_bytes():
    """Single ~10-12% headroom off physical VMEM (v5e/v6e: 128 MiB, v7x: 64 MiB)."""
    try:
        cap = pltpu.get_tpu_info().vmem_capacity_bytes
    except Exception:  # pragma: no cover - fallback works on every generation
        cap = 64 * 1024 * 1024
    return min(int(cap * 0.9), 112 * 1024 * 1024)


def _resident_bytes(d_io_pad, h_pad, buffers):
    """bf16 weights + f32 biases (sublane-padded), with the given buffer count."""
    weight_bytes = buffers * 2 * (2 * d_io_pad * h_pad + 2 * h_pad * h_pad)
    bias_bytes = buffers * 4 * (8 * h_pad + 8 * d_io_pad)
    return weight_bytes + bias_bytes


def _tile_bytes(tm, d_io_pad, h_pad):
    """Double-buffered bf16 x tile + double-buffered f32 out tile + ~3 live f32 acts."""
    return 2 * tm * d_io_pad * 2 + 2 * tm * d_io_pad * 4 + 3 * tm * max(d_io_pad, h_pad) * 4


def _choose_tm(batch_rows, d_io_pad, h_pad, vmem_limit, weight_buffers):
    budget = vmem_limit - _resident_bytes(d_io_pad, h_pad, weight_buffers)
    row_cap = max(8, _round_up(batch_rows, 8))
    if batch_rows >= 512:
        # Keep >= 2 grid steps: shards the "parallel" batch axis across both v7x TCs
        # and gives every generation DMA/compute overlap.  Each tile stays >= 256 rows
        # (v6e/v7x MXU is 2x256^2), so the roofline hit on 1-TC chips is ~1%.
        row_cap = min(row_cap, _round_up(pl.cdiv(batch_rows, 2), 256))
    for tm in (2048, 1536, 1024, 768, 512, 256, 128, 64, 32, 16, 8):
        if tm > row_cap:
            continue
        if _tile_bytes(tm, d_io_pad, h_pad) <= budget:
            return tm
    return 8


def _pick_tile(dim_pad):
    for t in (512, 256, 128):
        if dim_pad % t == 0:
            return t
    return dim_pad  # dims are padded to multiples of 128, so unreachable in practice


def _resident_spec(shape, single_buffer):
    """Grid-invariant (VMEM-resident) block; single-buffered when supported so the
    phantom second weight buffer does not eat TM headroom."""
    index_map = lambda i: (0, 0)
    if single_buffer:
        try:
            return pl.BlockSpec(shape, index_map, pipeline_mode=pl.Buffered(1))
        except Exception:
            pass
    return pl.BlockSpec(shape, index_map)


# ------------------------------------------------------------------------------ params


def init_params(key, imgsize, mainsize):
    """Deterministic init mimicking nn.Linear's default U(-1/sqrt(fan_in), +)."""
    d_io = 3 * imgsize ** 2
    dims = [(d_io, mainsize), (mainsize, mainsize),
            (mainsize, mainsize), (mainsize, d_io)]
    params = []
    for (fan_in, fan_out) in dims:
        key, kw, kb = jax.random.split(key, 3)
        bound = 1.0 / (fan_in ** 0.5)
        # stored transposed: (in_features, out_features)
        w_t = jax.random.uniform(kw, (fan_in, fan_out), jnp.float32, -bound, bound)
        b = jax.random.uniform(kb, (1, fan_out), jnp.float32, -bound, bound)
        params.append((w_t, b))
    return params


def prepare_params(params, imgsize, mainsize):
    """Zero-pad to lane-dense (multiples of 128) shapes and cast weights to bf16.

    Padded weight rows/cols AND the matching bias entries are zero, so ReLU(0)=0 keeps
    the padded hidden lanes exactly zero through every layer (no leakage).
    """
    d_io = 3 * imgsize ** 2
    d_io_pad = _round_up(d_io, 128)
    h_pad = _round_up(mainsize, 128)
    (w1, b1), (w2, b2), (w3, b3), (w4, b4) = params

    def pad2(w, rows, cols):
        return jnp.pad(w, ((0, rows - w.shape[0]), (0, cols - w.shape[1])))

    w1p = pad2(w1, d_io_pad, h_pad).astype(jnp.bfloat16)
    w2p = pad2(w2, h_pad, h_pad).astype(jnp.bfloat16)
    w3p = pad2(w3, h_pad, h_pad).astype(jnp.bfloat16)
    w4p = pad2(w4, h_pad, d_io_pad).astype(jnp.bfloat16)

    # Pack the three hidden-layer biases into one (8, h_pad) f32 slab (one DMA, clean
    # (8,128) layout); rows 3..7 are unused zeros.
    bh = jnp.zeros((8, h_pad), jnp.float32)
    bh = bh.at[0, :mainsize].set(b1.reshape(-1))
    bh = bh.at[1, :mainsize].set(b2.reshape(-1))
    bh = bh.at[2, :mainsize].set(b3.reshape(-1))
    b4p = jnp.zeros((1, d_io_pad), jnp.float32).at[0, :d_io].set(b4.reshape(-1))

    return (w1p, w2p, w3p, w4p, bh, b4p)


# ----------------------------------------------------------------------------- forward


def _linear_relu(x, w, b, out_dtype, vmem_limit):
    """One streamed layer: grid-tiled matmul + bias + ReLU (fallback path)."""
    M, K = x.shape
    _, N = w.shape
    tk = _pick_tile(K)
    tn = _pick_tile(N)
    tm = min(512, _round_up(M, 8))
    grid = (pl.cdiv(M, tm), N // tn, K // tk)
    return pl.pallas_call(
        _linear_relu_kernel,
        out_shape=jax.ShapeDtypeStruct((M, N), out_dtype),
        grid=grid,
        in_specs=[
            pl.BlockSpec((tm, tk), lambda i, j, k: (i, k)),
            pl.BlockSpec((tk, tn), lambda i, j, k: (k, j)),
            pl.BlockSpec((1, tn), lambda i, j, k: (0, j)),
        ],
        out_specs=pl.BlockSpec((tm, tn), lambda i, j, k: (i, j)),
        scratch_shapes=[pltpu.VMEM((tm, tn), jnp.float32)],
        compiler_params=pltpu.CompilerParams(
            dimension_semantics=("parallel", "parallel", "arbitrary"),
            vmem_limit_bytes=vmem_limit,
        ),
    )(x, w, b)


@functools.partial(jax.jit,
                   static_argnames=("imgsize", "mainsize", "weight_buffers",
                                    "force_streaming"))
def _forward_impl(x, prepared, *, imgsize, mainsize, weight_buffers, force_streaming):
    B = x.shape[0]
    d_io = 3 * imgsize ** 2
    d_io_pad = _round_up(d_io, 128)
    h_pad = _round_up(mainsize, 128)
    w1, w2, w3, w4, bh, b4 = prepared

    # Flatten exactly like x.reshape(B, -1) (NCHW row-major) and cast to bf16 here:
    # the cast fuses into the reshape/pad and halves the kernel's input HBM stream;
    # the math is unchanged because the layer-1 matmul consumed bf16 anyway.
    x_flat = x.reshape(B, d_io).astype(jnp.bfloat16)
    if d_io_pad != d_io:
        x_flat = jnp.pad(x_flat, ((0, 0), (0, d_io_pad - d_io)))
    # Only pad batch to a sublane multiple; a partial last TM tile is handled by the
    # grid (pl.cdiv) via masked stores.
    B8 = _round_up(B, 8)
    if B8 != B:
        x_flat = jnp.pad(x_flat, ((0, B8 - B), (0, 0)))

    vmem_limit = _vmem_limit_bytes()
    out_dtype = jnp.float32  # flip to jnp.bfloat16 to also halve the write stream

    # Fused path only when even worst-case (double-buffered) resident weights fit.
    resident_worst = _resident_bytes(d_io_pad, h_pad, 2)
    use_fused = (not force_streaming) and \
        (resident_worst + _tile_bytes(8, d_io_pad, h_pad) <= vmem_limit)

    if use_fused:
        single_buf = (weight_buffers == 1)
        tm = _choose_tm(B8, d_io_pad, h_pad, vmem_limit, weight_buffers)
        grid = (pl.cdiv(B8, tm),)
        out = pl.pallas_call(
            _ae_fused_kernel,
            out_shape=jax.ShapeDtypeStruct((B8, d_io_pad), out_dtype),
            grid=grid,
            in_specs=[
                pl.BlockSpec((tm, d_io_pad), lambda i: (i, 0)),   # x tile (pipelined)
                _resident_spec((d_io_pad, h_pad), single_buf),    # W1 (resident)
                _resident_spec((h_pad, h_pad), single_buf),       # W2 (resident)
                _resident_spec((h_pad, h_pad), single_buf),       # W3 (resident)
                _resident_spec((h_pad, d_io_pad), single_buf),    # W4 (resident)
                _resident_spec((8, h_pad), single_buf),           # b1..b3 packed
                _resident_spec((1, d_io_pad), single_buf),        # b4
            ],
            out_specs=pl.BlockSpec((tm, d_io_pad), lambda i: (i, 0)),
            compiler_params=pltpu.CompilerParams(
                dimension_semantics=("parallel",),
                vmem_limit_bytes=vmem_limit,
            ),
        )(x_flat, w1, w2, w3, w4, bh, b4)
    else:
        # Streamed fallback (e.g. v7x 64 MiB VMEM with large imgsize/mainsize): four
        # grid-tiled matmul+bias+ReLU calls; W1/W4 are tiled along d_io so no weight
        # has to be fully VMEM-resident.  Intermediates travel as bf16 (the fused
        # kernel applies the same bf16 rounding before each matmul).
        h = _linear_relu(x_flat, w1, bh[0:1, :], jnp.bfloat16, vmem_limit)
        h = _linear_relu(h, w2, bh[1:2, :], jnp.bfloat16, vmem_limit)
        h = _linear_relu(h, w3, bh[2:3, :], jnp.bfloat16, vmem_limit)
        out = _linear_relu(h, w4, b4, out_dtype, vmem_limit)

    out = out[:B, :d_io].astype(jnp.float32)
    return out.reshape(B, 3, imgsize, imgsize)


_WEIGHT_BUFFERS = None  # resolved on first fused call: 1 if pl.Buffered(1) lowers, else 2


def ae_linear_forward(x, prepared, *, imgsize, mainsize, force_streaming=False):
    """x: (B, 3, imgsize, imgsize) float32 (NCHW, matching the PyTorch module)."""
    global _WEIGHT_BUFFERS
    kwargs = dict(imgsize=imgsize, mainsize=mainsize, force_streaming=force_streaming)
    if _WEIGHT_BUFFERS is None and not force_streaming:
        try:
            out = _forward_impl(x, prepared, weight_buffers=1, **kwargs)
            jax.block_until_ready(out)
            _WEIGHT_BUFFERS = 1
            return out
        except Exception:
            # This jax/Mosaic build rejects single-buffered resident specs; fall back
            # to the default double-buffered specs (budget math follows suit).
            _WEIGHT_BUFFERS = 2
    buffers = _WEIGHT_BUFFERS if _WEIGHT_BUFFERS is not None else 2
    return _forward_impl(x, prepared, weight_buffers=buffers, **kwargs)


# -------------------------------------------------------------------------------- main


if __name__ == "__main__":
    imgsize = 16      # -> input features 3*16*16 = 768
    mainsize = 32

    key = jax.random.PRNGKey(0)
    key, kx = jax.random.split(key)

    params = init_params(key, imgsize, mainsize)
    prepared = prepare_params(params, imgsize, mainsize)

    # Pure-JAX reference of the same math (bf16 matmuls, f32 accumulation/epilogue).
    def ref(x):
        h = x.reshape(x.shape[0], -1)
        for (w_t, b) in params:
            h = jnp.dot(h.astype(jnp.bfloat16), w_t.astype(jnp.bfloat16),
                        preferred_element_type=jnp.float32) + b
            h = jnp.maximum(h, 0.0)
        return h.reshape(x.shape[0], 3, imgsize, imgsize)

    # 1) Small batch through the fused kernel.
    x = jax.random.normal(kx, (2, 3, imgsize, imgsize), jnp.float32)
    y = ae_linear_forward(x, prepared, imgsize=imgsize, mainsize=mainsize)
    jax.block_until_ready(y)
    assert y.shape == (2, 3, imgsize, imgsize)
    assert jnp.allclose(y, ref(x), atol=1e-3, rtol=1e-3), (
        float(jnp.max(jnp.abs(y - ref(x)))))

    # 2) Batch that leaves a partial last TM tile (B8=24, tm=16) -> masked-store path.
    key, kx2 = jax.random.split(key)
    x2 = jax.random.normal(kx2, (20, 3, imgsize, imgsize), jnp.float32)
    y2 = ae_linear_forward(x2, prepared, imgsize=imgsize, mainsize=mainsize)
    jax.block_until_ready(y2)
    assert jnp.allclose(y2, ref(x2), atol=1e-3, rtol=1e-3), (
        float(jnp.max(jnp.abs(y2 - ref(x2)))))

    # 3) Exercise the streamed-weights fallback (used when resident weights would not
    #    fit VMEM, e.g. large models on v7x's 64 MiB).
    y3 = ae_linear_forward(x, prepared, imgsize=imgsize, mainsize=mainsize,
                           force_streaming=True)
    jax.block_until_ready(y3)
    assert jnp.allclose(y3, ref(x), atol=1e-3, rtol=1e-3), (
        float(jnp.max(jnp.abs(y3 - ref(x)))))

    print("KERNEL_OK")
</pallas_src>

<mosaic_0001>
module attributes {stable_mosaic.version = 11 : i64} {
  func.func @_ae_fused_kernel(%arg0: i32, %arg1: memref<8x768xbf16, #tpu.memory_space<vmem>>, %arg2: memref<768x128xbf16, #tpu.memory_space<vmem>>, %arg3: memref<128x128xbf16, #tpu.memory_space<vmem>>, %arg4: memref<128x128xbf16, #tpu.memory_space<vmem>>, %arg5: memref<128x768xbf16, #tpu.memory_space<vmem>>, %arg6: memref<8x128xf32, #tpu.memory_space<vmem>>, %arg7: memref<1x768xf32, #tpu.memory_space<vmem>>, %arg8: memref<8x768xf32, #tpu.memory_space<vmem>>) attributes {dimension_semantics = [#tpu.dimension_semantics<parallel>], iteration_bounds = array<i64: 1>, scalar_prefetch = 0 : i64, scratch_operands = 0 : i64, tpu.core_type = #tpu.core_type<tc>, window_params = [{transform_indices = @transform_0, window_bounds = array<i64: 8, 768>}, {pipeline_mode = #tpu.pipeline_mode<synchronous>, transform_indices = @transform_1, window_bounds = array<i64: 768, 128>}, {pipeline_mode = #tpu.pipeline_mode<synchronous>, transform_indices = @transform_2, window_bounds = array<i64: 128, 128>}, {pipeline_mode = #tpu.pipeline_mode<synchronous>, transform_indices = @transform_3, window_bounds = array<i64: 128, 128>}, {pipeline_mode = #tpu.pipeline_mode<synchronous>, transform_indices = @transform_4, window_bounds = array<i64: 128, 768>}, {pipeline_mode = #tpu.pipeline_mode<synchronous>, transform_indices = @transform_5, window_bounds = array<i64: 8, 128>}, {pipeline_mode = #tpu.pipeline_mode<synchronous>, transform_indices = @transform_6, window_bounds = array<i64: 1, 768>}, {transform_indices = @transform_7, window_bounds = array<i64: 8, 768>}]} {
    %c0 = arith.constant 0 : index
    %c0_0 = arith.constant 0 : index
    %0 = vector.load %arg1[%c0, %c0_0] : memref<8x768xbf16, #tpu.memory_space<vmem>>, vector<8x768xbf16>
    %c0_1 = arith.constant 0 : index
    %c0_2 = arith.constant 0 : index
    %1 = vector.load %arg2[%c0_1, %c0_2] : memref<768x128xbf16, #tpu.memory_space<vmem>>, vector<768x128xbf16>
    %cst = arith.constant dense<0.000000e+00> : vector<8x128xf32>
    %2 = tpu.matmul %0, %1, %cst {dimension_numbers = #tpu.dot_dimension_numbers<[1], [0], [0], [1], [0, 0, 1, 1], [], []>} : vector<8x768xbf16>, vector<768x128xbf16>, vector<8x128xf32> -> vector<8x128xf32>
    %c0_3 = arith.constant 0 : index
    %c0_4 = arith.constant 0 : index
    %3 = vector.load %arg6[%c0_3, %c0_4] : memref<8x128xf32, #tpu.memory_space<vmem>>, vector<1x128xf32>
    %4 = vector.broadcast %3 : vector<1x128xf32> to vector<8x128xf32>
    %5 = arith.addf %2, %4 : vector<8x128xf32>
    %cst_5 = arith.constant 0.000000e+00 : f32
    %6 = vector.broadcast %cst_5 : f32 to vector<8x128xf32>
    %7 = arith.maximumf %5, %6 : vector<8x128xf32>
    %8 = arith.truncf %7 : vector<8x128xf32> to vector<8x128xbf16>
    %c0_6 = arith.constant 0 : index
    %c0_7 = arith.constant 0 : index
    %9 = vector.load %arg3[%c0_6, %c0_7] : memref<128x128xbf16, #tpu.memory_space<vmem>>, vector<128x128xbf16>
    %cst_8 = arith.constant dense<0.000000e+00> : vector<8x128xf32>
    %10 = tpu.matmul %8, %9, %cst_8 {dimension_numbers = #tpu.dot_dimension_numbers<[1], [0], [0], [1], [0, 0, 1, 1], [], []>} : vector<8x128xbf16>, vector<128x128xbf16>, vector<8x128xf32> -> vector<8x128xf32>
    %c1 = arith.constant 1 : index
    %c0_9 = arith.constant 0 : index
    %11 = vector.load %arg6[%c1, %c0_9] : memref<8x128xf32, #tpu.memory_space<vmem>>, vector<1x128xf32>
    %12 = vector.broadcast %11 : vector<1x128xf32> to vector<8x128xf32>
    %13 = arith.addf %10, %12 : vector<8x128xf32>
    %cst_10 = arith.constant 0.000000e+00 : f32
    %14 = vector.broadcast %cst_10 : f32 to vector<8x128xf32>
    %15 = arith.maximumf %13, %14 : vector<8x128xf32>
    %16 = arith.truncf %15 : vector<8x128xf32> to vector<8x128xbf16>
    %c0_11 = arith.constant 0 : index
    %c0_12 = arith.constant 0 : index
    %17 = vector.load %arg4[%c0_11, %c0_12] : memref<128x128xbf16, #tpu.memory_space<vmem>>, vector<128x128xbf16>
    %cst_13 = arith.constant dense<0.000000e+00> : vector<8x128xf32>
    %18 = tpu.matmul %16, %17, %cst_13 {dimension_numbers = #tpu.dot_dimension_numbers<[1], [0], [0], [1], [0, 0, 1, 1], [], []>} : vector<8x128xbf16>, vector<128x128xbf16>, vector<8x128xf32> -> vector<8x128xf32>
    %c2 = arith.constant 2 : index
    %c0_14 = arith.constant 0 : index
    %19 = vector.load %arg6[%c2, %c0_14] : memref<8x128xf32, #tpu.memory_space<vmem>>, vector<1x128xf32>
    %20 = vector.broadcast %19 : vector<1x128xf32> to vector<8x128xf32>
    %21 = arith.addf %18, %20 : vector<8x128xf32>
    %cst_15 = arith.constant 0.000000e+00 : f32
    %22 = vector.broadcast %cst_15 : f32 to vector<8x128xf32>
    %23 = arith.maximumf %21, %22 : vector<8x128xf32>
    %24 = arith.truncf %23 : vector<8x128xf32> to vector<8x128xbf16>
    %c0_16 = arith.constant 0 : index
    %c0_17 = arith.constant 0 : index
    %25 = vector.load %arg5[%c0_16, %c0_17] : memref<128x768xbf16, #tpu.memory_space<vmem>>, vector<128x768xbf16>
    %cst_18 = arith.constant dense<0.000000e+00> : vector<8x768xf32>
    %26 = tpu.matmul %24, %25, %cst_18 {dimension_numbers = #tpu.dot_dimension_numbers<[1], [0], [0], [1], [0, 0, 1, 1], [], []>} : vector<8x128xbf16>, vector<128x768xbf16>, vector<8x768xf32> -> vector<8x768xf32>
    %c0_19 = arith.constant 0 : index
    %c0_20 = arith.constant 0 : index
    %27 = vector.load %arg7[%c0_19, %c0_20] : memref<1x768xf32, #tpu.memory_space<vmem>>, vector<1x768xf32>
    %28 = vector.broadcast %27 : vector<1x768xf32> to vector<8x768xf32>
    %29 = arith.addf %26, %28 : vector<8x768xf32>
    %cst_21 = arith.constant 0.000000e+00 : f32
    %30 = vector.broadcast %cst_21 : f32 to vector<8x768xf32>
    %31 = arith.maximumf %29, %30 : vector<8x768xf32>
    %c0_22 = arith.constant 0 : index
    %c0_23 = arith.constant 0 : index
    %32 = vector.load %arg8[%c0_22, %c0_23] : memref<8x768xf32, #tpu.memory_space<vmem>>, vector<8x768xf32>
    tpu.vector_store %arg8[%c0_22, %c0_23], %31 {strides = array<i32>} : memref<8x768xf32, #tpu.memory_space<vmem>>, vector<8x768xf32>,
    return
  }
  func.func @transform_0(%arg0: i32) -> (i32, i32) {
    %c0_i32 = arith.constant 0 : i32
    %c0_i32_0 = arith.constant 0 : i32
    return %arg0, %c0_i32 : i32, i32
  }
  func.func @transform_1(%arg0: i32) -> (i32, i32) {
    %c0_i32 = arith.constant 0 : i32
    %c0_i32_0 = arith.constant 0 : i32
    %c0_i32_1 = arith.constant 0 : i32
    return %c0_i32, %c0_i32_0 : i32, i32
  }
  func.func @transform_2(%arg0: i32) -> (i32, i32) {
    %c0_i32 = arith.constant 0 : i32
    %c0_i32_0 = arith.constant 0 : i32
    %c0_i32_1 = arith.constant 0 : i32
    return %c0_i32, %c0_i32_0 : i32, i32
  }
  func.func @transform_3(%arg0: i32) -> (i32, i32) {
    %c0_i32 = arith.constant 0 : i32
    %c0_i32_0 = arith.constant 0 : i32
    %c0_i32_1 = arith.constant 0 : i32
    return %c0_i32, %c0_i32_0 : i32, i32
  }
  func.func @transform_4(%arg0: i32) -> (i32, i32) {
    %c0_i32 = arith.constant 0 : i32
    %c0_i32_0 = arith.constant 0 : i32
    %c0_i32_1 = arith.constant 0 : i32
    return %c0_i32, %c0_i32_0 : i32, i32
  }
  func.func @transform_5(%arg0: i32) -> (i32, i32) {
    %c0_i32 = arith.constant 0 : i32
    %c0_i32_0 = arith.constant 0 : i32
    %c0_i32_1 = arith.constant 0 : i32
    return %c0_i32, %c0_i32_0 : i32, i32
  }
  func.func @transform_6(%arg0: i32) -> (i32, i32) {
    %c0_i32 = arith.constant 0 : i32
    %c0_i32_0 = arith.constant 0 : i32
    %c0_i32_1 = arith.constant 0 : i32
    return %c0_i32, %c0_i32_0 : i32, i32
  }
  func.func @transform_7(%arg0: i32) -> (i32, i32) {
    %c0_i32 = arith.constant 0 : i32
    %c0_i32_0 = arith.constant 0 : i32
    return %arg0, %c0_i32 : i32, i32
  }
}

module attributes {stable_mosaic.version = 11 : i64} {
  func.func @_ae_fused_kernel(%arg0: i32, %arg1: memref<8x768xbf16, #tpu.memory_space<vmem>>, %arg2: memref<768x128xbf16, #tpu.memory_space<vmem>>, %arg3: memref<128x128xbf16, #tpu.memory_space<vmem>>, %arg4: memref<128x128xbf16, #tpu.memory_space<vmem>>, %arg5: memref<128x768xbf16, #tpu.memory_space<vmem>>, %arg6: memref<8x128xf32, #tpu.memory_space<vmem>>, %arg7: memref<1x768xf32, #tpu.memory_space<vmem>>, %arg8: memref<8x768xf32, #tpu.memory_space<vmem>>) attributes {dimension_semantics = [#tpu.dimension_semantics<parallel>], iteration_bounds = array<i64: 1>, scalar_prefetch = 0 : i64, scratch_operands = 0 : i64, tpu.core_type = #tpu.core_type<tc>, window_params = [{transform_indices = @transform_0, window_bounds = array<i64: 8, 768>}, {pipeline_mode = #tpu.pipeline_mode<synchronous>, transform_indices = @transform_1, window_bounds = array<i64: 768, 128>}, {pipeline_mode = #tpu.pipeline_mode<synchronous>, transform_indices = @transform_2, window_bounds = array<i64: 128, 128>}, {pipeline_mode = #tpu.pipeline_mode<synchronous>, transform_indices = @transform_3, window_bounds = array<i64: 128, 128>}, {pipeline_mode = #tpu.pipeline_mode<synchronous>, transform_indices = @transform_4, window_bounds = array<i64: 128, 768>}, {pipeline_mode = #tpu.pipeline_mode<synchronous>, transform_indices = @transform_5, window_bounds = array<i64: 8, 128>}, {pipeline_mode = #tpu.pipeline_mode<synchronous>, transform_indices = @transform_6, window_bounds = array<i64: 1, 768>}, {transform_indices = @transform_7, window_bounds = array<i64: 8, 768>}]} {
    %c0 = arith.constant 0 : index
    %c0_0 = arith.constant 0 : index
    %0 = vector.load %arg1[%c0, %c0_0] : memref<8x768xbf16, #tpu.memory_space<vmem>>, vector<8x768xbf16>
    %c0_1 = arith.constant 0 : index
    %c0_2 = arith.constant 0 : index
    %1 = vector.load %arg2[%c0_1, %c0_2] : memref<768x128xbf16, #tpu.memory_space<vmem>>, vector<768x128xbf16>
    %cst = arith.constant dense<0.000000e+00> : vector<8x128xf32>
    %2 = tpu.matmul %0, %1, %cst {dimension_numbers = #tpu.dot_dimension_numbers<[1], [0], [0], [1], [0, 0, 1, 1], [], []>} : vector<8x768xbf16>, vector<768x128xbf16>, vector<8x128xf32> -> vector<8x128xf32>
    %c0_3 = arith.constant 0 : index
    %c0_4 = arith.constant 0 : index
    %3 = vector.load %arg6[%c0_3, %c0_4] : memref<8x128xf32, #tpu.memory_space<vmem>>, vector<1x128xf32>
    %4 = vector.broadcast %3 : vector<1x128xf32> to vector<8x128xf32>
    %5 = arith.addf %2, %4 : vector<8x128xf32>
    %cst_5 = arith.constant 0.000000e+00 : f32
    %6 = vector.broadcast %cst_5 : f32 to vector<8x128xf32>
    %7 = arith.maximumf %5, %6 : vector<8x128xf32>
    %8 = arith.truncf %7 : vector<8x128xf32> to vector<8x128xbf16>
    %c0_6 = arith.constant 0 : index
    %c0_7 = arith.constant 0 : index
    %9 = vector.load %arg3[%c0_6, %c0_7] : memref<128x128xbf16, #tpu.memory_space<vmem>>, vector<128x128xbf16>
    %cst_8 = arith.constant dense<0.000000e+00> : vector<8x128xf32>
    %10 = tpu.matmul %8, %9, %cst_8 {dimension_numbers = #tpu.dot_dimension_numbers<[1], [0], [0], [1], [0, 0, 1, 1], [], []>} : vector<8x128xbf16>, vector<128x128xbf16>, vector<8x128xf32> -> vector<8x128xf32>
    %c1 = arith.constant 1 : index
    %c0_9 = arith.constant 0 : index
    %11 = vector.load %arg6[%c1, %c0_9] : memref<8x128xf32, #tpu.memory_space<vmem>>, vector<1x128xf32>
    %12 = vector.broadcast %11 : vector<1x128xf32> to vector<8x128xf32>
    %13 = arith.addf %10, %12 : vector<8x128xf32>
    %cst_10 = arith.constant 0.000000e+00 : f32
    %14 = vector.broadcast %cst_10 : f32 to vector<8x128xf32>
    %15 = arith.maximumf %13, %14 : vector<8x128xf32>
    %16 = arith.truncf %15 : vector<8x128xf32> to vector<8x128xbf16>
    %c0_11 = arith.constant 0 : index
    %c0_12 = arith.constant 0 : index
    %17 = vector.load %arg4[%c0_11, %c0_12] : memref<128x128xbf16, #tpu.memory_space<vmem>>, vector<128x128xbf16>
    %cst_13 = arith.constant dense<0.000000e+00> : vector<8x128xf32>
    %18 = tpu.matmul %16, %17, %cst_13 {dimension_numbers = #tpu.dot_dimension_numbers<[1], [0], [0], [1], [0, 0, 1, 1], [], []>} : vector<8x128xbf16>, vector<128x128xbf16>, vector<8x128xf32> -> vector<8x128xf32>
    %c2 = arith.constant 2 : index
    %c0_14 = arith.constant 0 : index
    %19 = vector.load %arg6[%c2, %c0_14] : memref<8x128xf32, #tpu.memory_space<vmem>>, vector<1x128xf32>
    %20 = vector.broadcast %19 : vector<1x128xf32> to vector<8x128xf32>
    %21 = arith.addf %18, %20 : vector<8x128xf32>
    %cst_15 = arith.constant 0.000000e+00 : f32
    %22 = vector.broadcast %cst_15 : f32 to vector<8x128xf32>
    %23 = arith.maximumf %21, %22 : vector<8x128xf32>
    %24 = arith.truncf %23 : vector<8x128xf32> to vector<8x128xbf16>
    %c0_16 = arith.constant 0 : index
    %c0_17 = arith.constant 0 : index
    %25 = vector.load %arg5[%c0_16, %c0_17] : memref<128x768xbf16, #tpu.memory_space<vmem>>, vector<128x768xbf16>
    %cst_18 = arith.constant dense<0.000000e+00> : vector<8x768xf32>
    %26 = tpu.matmul %24, %25, %cst_18 {dimension_numbers = #tpu.dot_dimension_numbers<[1], [0], [0], [1], [0, 0, 1, 1], [], []>} : vector<8x128xbf16>, vector<128x768xbf16>, vector<8x768xf32> -> vector<8x768xf32>
    %c0_19 = arith.constant 0 : index
    %c0_20 = arith.constant 0 : index
    %27 = vector.load %arg7[%c0_19, %c0_20] : memref<1x768xf32, #tpu.memory_space<vmem>>, vector<1x768xf32>
    %28 = vector.broadcast %27 : vector<1x768xf32> to vector<8x768xf32>
    %29 = arith.addf %26, %28 : vector<8x768xf32>
    %cst_21 = arith.constant 0.000000e+00 : f32
    %30 = vector.broadcast %cst_21 : f32 to vector<8x768xf32>
    %31 = arith.maximumf %29, %30 : vector<8x768xf32>
    %c0_22 = arith.constant 0 : index
    %c0_23 = arith.constant 0 : index
    %32 = vector.load %arg8[%c0_22, %c0_23] : memref<8x768xf32, #tpu.memory_space<vmem>>, vector<8x768xf32>
    tpu.vector_store %arg8[%c0_22, %c0_23], %31 {strides = array<i32>} : memref<8x768xf32, #tpu.memory_space<vmem>>, vector<8x768xf32>,
    return
  }
  func.func @transform_0(%arg0: i32) -> (i32, i32) {
    %c0_i32 = arith.constant 0 : i32
    %c0_i32_0 = arith.constant 0 : i32
    return %arg0, %c0_i32 : i32, i32
  }
  func.func @transform_1(%arg0: i32) -> (i32, i32) {
    %c0_i32 = arith.constant 0 : i32
    %c0_i32_0 = arith.constant 0 : i32
    %c0_i32_1 = arith.constant 0 : i32
    return %c0_i32, %c0_i32_0 : i32, i32
  }
  func.func @transform_2(%arg0: i32) -> (i32, i32) {
    %c0_i32 = arith.constant 0 : i32
    %c0_i32_0 = arith.constant 0 : i32
    %c0_i32_1 = arith.constant 0 : i32
    return %c0_i32, %c0_i32_0 : i32, i32
  }
  func.func @transform_3(%arg0: i32) -> (i32, i32) {
    %c0_i32 = arith.constant 0 : i32
    %c0_i32_0 = arith.constant 0 : i32
    %c0_i32_1 = arith.constant 0 : i32
    return %c0_i32, %c0_i32_0 : i32, i32
  }
  func.func @transform_4(%arg0: i32) -> (i32, i32) {
    %c0_i32 = arith.constant 0 : i32
    %c0_i32_0 = arith.constant 0 : i32
    %c0_i32_1 = arith.constant 0 : i32
    return %c0_i32, %c0_i32_0 : i32, i32
  }
  func.func @transform_5(%arg0: i32) -> (i32, i32) {
    %c0_i32 = arith.constant 0 : i32
    %c0_i32_0 = arith.constant 0 : i32
    %c0_i32_1 = arith.constant 0 : i32
    return %c0_i32, %c0_i32_0 : i32, i32
  }
  func.func @transform_6(%arg0: i32) -> (i32, i32) {
    %c0_i32 = arith.constant 0 : i32
    %c0_i32_0 = arith.constant 0 : i32
    %c0_i32_1 = arith.constant 0 : i32
    return %c0_i32, %c0_i32_0 : i32, i32
  }
  func.func @transform_7(%arg0: i32) -> (i32, i32) {
    %c0_i32 = arith.constant 0 : i32
    %c0_i32_0 = arith.constant 0 : i32
    return %arg0, %c0_i32 : i32, i32
  }
}

</mosaic_0001>

<llo_original>
// kernel: _forward_impl.1
$region0: #{_forward_impl.1}
  #allocation0 [shape = 'u32[]', space=smem, size = 0x4, offset = 0x4, fixed_abs, tag = 'smem constant byte address 0x4 - core index']
  #allocation1 [shape = 'u32[144,128]{1,0:T(1,128)}', space=vmem, size = 0x12000, scoped, tag = 'internal scratch']
  %s0 = inlined_call_operand.vmem [shape: bf16[8,768], index: 0, kind: input, shape index: {}]
  %s1 = inlined_call_operand.hbm [shape: bf16[768,128], index: 1, kind: input, shape index: {}]
  %s2 = inlined_call_operand.vmem [shape: bf16[128,128], index: 2, kind: input, shape index: {}]
  %s3 = inlined_call_operand.vmem [shape: bf16[128,128], index: 3, kind: input, shape index: {}]
  %s4 = inlined_call_operand.hbm [shape: bf16[128,768], index: 4, kind: input, shape index: {}]
  %s5 = inlined_call_operand.vmem [shape: f32[8,128], index: 5, kind: input, shape index: {}]
  %s6 = inlined_call_operand.vmem [shape: f32[1,768], index: 6, kind: input, shape index: {}]
  %s7 = inlined_call_operand.vmem [shape: f32[8,768], index: 7, kind: output, shape index: {}]
  %s8 = sld [smem:[#allocation0]]
  $region46: #{_forward_impl.1} parent=0
    _
  %s10 = ssub.s32 1, %s8
  %s11 = scalar_select 0, %s10, %s8
  $region1: #{_forward_impl.1} parent=0
    #allocation2 [shape = 'u8[196608]{0}', space=vmem, size = 0x30000, scoped, tag = 'input window, operand 1, single buffered']
    #allocation3 [shape = 's32[1]{0}', space=sflag, size = 0x4, scoped, tag = 'scoped memory for _forward_impl.1']
    #allocation4 [shape = 'u8[196608]{0}', space=vmem, size = 0x30000, scoped, tag = 'input window, operand 4, single buffered']
    #allocation5 [shape = 's32[1]{0}', space=sflag, size = 0x4, scoped, tag = 'scoped memory for _forward_impl.1']
    %12 = vsyncpa [#allocation3], 0
    %13 = vsyncpa [#allocation5], 0
    // Predicated region
    $region2: #{_forward_impl.1} parent=1 // pred_check
      _
    $region3: #{_forward_impl.1} parent=1 // pred_check_branch
      %15 = sbr.rel (0) target = $region5
    $region4: #{_forward_impl.1} parent=1 // pred_region
      _
    $region5: #{_forward_impl.1} parent=1 // pred_fallthru
      _
    // Predicated region
    $region6: #{_forward_impl.1} parent=1 // pred_check
      _
    $region7: #{_forward_impl.1} parent=1 // pred_check_branch
      %17 = sbr.rel (0) target = $region9
    $region8: #{_forward_impl.1} parent=1 // pred_region
      %s19 = ssub.s32 6144, 6144
      %20 = vsyncadd [#allocation3], %s19
      %s21 = sshll.u32 [#allocation2], 4
      %s22 = int_to_ptr.vmem [resolvable:$true] %s21
      %27 = dma.hbm_to_vmem [thread:$0]  %s1, 6144, %s22, [#allocation3], 64, 64, 4
    $region9: #{_forward_impl.1} parent=1 // pred_fallthru
      _
    // Predicated region
    $region10: #{_forward_impl.1} parent=1 // pred_check
      _
    $region11: #{_forward_impl.1} parent=1 // pred_check_branch
      %29 = sbr.rel (0) target = $region13
    $region12: #{_forward_impl.1} parent=1 // pred_region
      _
    $region13: #{_forward_impl.1} parent=1 // pred_fallthru
      _
    // Predicated region
    $region14: #{_forward_impl.1} parent=1 // pred_check
      _
    $region15: #{_forward_impl.1} parent=1 // pred_check_branch
      %31 = sbr.rel (0) target = $region17
    $region16: #{_forward_impl.1} parent=1 // pred_region
      _
    $region17: #{_forward_impl.1} parent=1 // pred_fallthru
      _
    // Predicated region
    $region18: #{_forward_impl.1} parent=1 // pred_check
      _
    $region19: #{_forward_impl.1} parent=1 // pred_check_branch
      %33 = sbr.rel (0) target = $region21
    $region20: #{_forward_impl.1} parent=1 // pred_region
      %s35 = ssub.s32 6144, 6144
      %36 = vsyncadd [#allocation5], %s35
      %s37 = sshll.u32 [#allocation4], 4
      %s38 = int_to_ptr.vmem [resolvable:$true] %s37
      %43 = dma.hbm_to_vmem [thread:$0]  %s4, 6144, %s38, [#allocation5], 384, 384, 24
    $region21: #{_forward_impl.1} parent=1 // pred_fallthru
      _
    // Predicated region
    $region22: #{_forward_impl.1} parent=1 // pred_check
      _
    $region23: #{_forward_impl.1} parent=1 // pred_check_branch
      %45 = sbr.rel (0) target = $region25
    $region24: #{_forward_impl.1} parent=1 // pred_region
      _
    $region25: #{_forward_impl.1} parent=1 // pred_fallthru
      _
    // Predicated region
    $region26: #{_forward_impl.1} parent=1 // pred_check
      _
    $region27: #{_forward_impl.1} parent=1 // pred_check_branch
      %47 = sbr.rel (0) target = $region29
    $region28: #{_forward_impl.1} parent=1 // pred_region
      _
    $region29: #{_forward_impl.1} parent=1 // pred_fallthru
      _
    // Predicated region
    $region30: #{_forward_impl.1} parent=1 // pred_check
      _
    $region31: #{_forward_impl.1} parent=1 // pred_check_branch
      %49 = sbr.rel (0) target = $region33
    $region32: #{_forward_impl.1} parent=1 // pred_region
      %50 = dma.done [#allocation3], 6144
    $region33: #{_forward_impl.1} parent=1 // pred_fallthru
      _
    // Predicated region
    $region34: #{_forward_impl.1} parent=1 // pred_check
      _
    $region35: #{_forward_impl.1} parent=1 // pred_check_branch
      %52 = sbr.rel (0) target = $region37
    $region36: #{_forward_impl.1} parent=1 // pred_region
      %53 = dma.done [#allocation5], 6144
    $region37: #{_forward_impl.1} parent=1 // pred_fallthru
      _
    %v55 = vld [vmem:[%s0] sm:$0xff]
    %v56 = vld [vmem:[%s0 + $0x8] sm:$0xff]
    %v57 = vld [vmem:[%s0 + $0x10] sm:$0xff]
    %v58 = vld [vmem:[#allocation2] sm:$0xf]
    %v59 = vld [vmem:[#allocation2 + $0x4] sm:$0xf]
    %v60 = vld [vmem:[#allocation2 + $0x8] sm:$0xf]
    %v61 = vld [vmem:[#allocation2 + $0xc] sm:$0xf]
    %v62 = vld [vmem:[#allocation2 + $0x10] sm:$0xf]
    %v63 = vld [vmem:[#allocation2 + $0x14] sm:$0xf]
    %v64 = vld [vmem:[#allocation2 + $0x18] sm:$0xf]
    %v65 = vld [vmem:[#allocation2 + $0x1c] sm:$0xf]
    %v66 = vld [vmem:[#allocation2 + $0x20] sm:$0xf]
    %v67 = vld [vmem:[#allocation2 + $0x24] sm:$0xf]
    %v68 = vld [vmem:[#allocation2 + $0x28] sm:$0xf]
    %v69 = vld [vmem:[#allocation2 + $0x2c] sm:$0xf]
    %v70 = vld [vmem:[#allocation2 + $0x30] sm:$0xf]
    %v71 = vld [vmem:[#allocation2 + $0x34] sm:$0xf]
    %v72 = vld [vmem:[#allocation2 + $0x38] sm:$0xf]
    %v73 = vld [vmem:[#allocation2 + $0x3c] sm:$0xf]
    %v74 = vld [vmem:[#allocation2 + $0x40] sm:$0xf]
    %v75 = vld [vmem:[#allocation2 + $0x44] sm:$0xf]
    %v76 = vld [vmem:[#allocation2 + $0x48] sm:$0xf]
    %v77 = vld [vmem:[#allocation2 + $0x4c] sm:$0xf]
    %v78 = vld [vmem:[#allocation2 + $0x50] sm:$0xf]
    %v79 = vld [vmem:[#allocation2 + $0x54] sm:$0xf]
    %v80 = vld [vmem:[#allocation2 + $0x58] sm:$0xf]
    %v81 = vld [vmem:[#allocation2 + $0x5c] sm:$0xf]
    %v82 = vld [vmem:[#allocation2 + $0x60] sm:$0xf]
    %v83 = vld [vmem:[#allocation2 + $0x64] sm:$0xf]
    %v84 = vld [vmem:[#allocation2 + $0x68] sm:$0xf]
    %v85 = vld [vmem:[#allocation2 + $0x6c] sm:$0xf]
    %v86 = vld [vmem:[#allocation2 + $0x70] sm:$0xf]
    %v87 = vld [vmem:[#allocation2 + $0x74] sm:$0xf]
    %v88 = vld [vmem:[#allocation2 + $0x78] sm:$0xf]
    %v89 = vld [vmem:[#allocation2 + $0x7c] sm:$0xf]
    %v90 = vld [vmem:[#allocation2 + $0x80] sm:$0xf]
    %v91 = vld [vmem:[#allocation2 + $0x84] sm:$0xf]
    %v92 = vld [vmem:[#allocation2 + $0x88] sm:$0xf]
    %v93 = vld [vmem:[#allocation2 + $0x8c] sm:$0xf]
    %v94 = vld [vmem:[#allocation2 + $0x90] sm:$0xf]
    %v95 = vld [vmem:[#allocation2 + $0x94] sm:$0xf]
    %v96 = vld [vmem:[#allocation2 + $0x98] sm:$0xf]
    %v97 = vld [vmem:[#allocation2 + $0x9c] sm:$0xf]
    %v98 = vld [vmem:[#allocation2 + $0xa0] sm:$0xf]
    %v99 = vld [vmem:[#allocation2 + $0xa4] sm:$0xf]
    %v100 = vld [vmem:[#allocation2 + $0xa8] sm:$0xf]
    %v101 = vld [vmem:[#allocation2 + $0xac] sm:$0xf]
    %v102 = vld [vmem:[#allocation2 + $0xb0] sm:$0xf]
    %v103 = vld [vmem:[#allocation2 + $0xb4] sm:$0xf]
    %v104 = vld [vmem:[#allocation2 + $0xb8] sm:$0xf]
    %v105 = vld [vmem:[#allocation2 + $0xbc] sm:$0xf]
    %v106 = vld [vmem:[#allocation2 + $0xc0] sm:$0xf]
    %v107 = vld [vmem:[#allocation2 + $0xc4] sm:$0xf]
    %v108 = vld [vmem:[#allocation2 + $0xc8] sm:$0xf]
    %v109 = vld [vmem:[#allocation2 + $0xcc] sm:$0xf]
    %v110 = vld [vmem:[#allocation2 + $0xd0] sm:$0xf]
    %v111 = vld [vmem:[#allocation2 + $0xd4] sm:$0xf]
    %v112 = vld [vmem:[#allocation2 + $0xd8] sm:$0xf]
    %v113 = vld [vmem:[#allocation2 + $0xdc] sm:$0xf]
    %v114 = vld [vmem:[#allocation2 + $0xe0] sm:$0xf]
    %v115 = vld [vmem:[#allocation2 + $0xe4] sm:$0xf]
    %v116 = vld [vmem:[#allocation2 + $0xe8] sm:$0xf]
    %v117 = vld [vmem:[#allocation2 + $0xec] sm:$0xf]
    %v118 = vld [vmem:[#allocation2 + $0xf0] sm:$0xf]
    %v119 = vld [vmem:[#allocation2 + $0xf4] sm:$0xf]
    %v120 = vld [vmem:[#allocation2 + $0xf8] sm:$0xf]
    %v121 = vld [vmem:[#allocation2 + $0xfc] sm:$0xf]
    %v122 = vld [vmem:[#allocation2 + $0x100] sm:$0xf]
    %v123 = vld [vmem:[#allocation2 + $0x104] sm:$0xf]
    %v124 = vld [vmem:[#allocation2 + $0x108] sm:$0xf]
    %v125 = vld [vmem:[#allocation2 + $0x10c] sm:$0xf]
    %v126 = vld [vmem:[#allocation2 + $0x110] sm:$0xf]
    %v127 = vld [vmem:[#allocation2 + $0x114] sm:$0xf]
    %v128 = vld [vmem:[#allocation2 + $0x118] sm:$0xf]
    %v129 = vld [vmem:[#allocation2 + $0x11c] sm:$0xf]
    %v130 = vld [vmem:[#allocation2 + $0x120] sm:$0xf]
    %v131 = vld [vmem:[#allocation2 + $0x124] sm:$0xf]
    %v132 = vld [vmem:[#allocation2 + $0x128] sm:$0xf]
    %v133 = vld [vmem:[#allocation2 + $0x12c] sm:$0xf]
    %v134 = vld [vmem:[#allocation2 + $0x130] sm:$0xf]
    %v135 = vld [vmem:[#allocation2 + $0x134] sm:$0xf]
    %v136 = vld [vmem:[#allocation2 + $0x138] sm:$0xf]
    %v137 = vld [vmem:[#allocation2 + $0x13c] sm:$0xf]
    %v138 = vld [vmem:[#allocation2 + $0x140] sm:$0xf]
    %v139 = vld [vmem:[#allocation2 + $0x144] sm:$0xf]
    %v140 = vld [vmem:[#allocation2 + $0x148] sm:$0xf]
    %v141 = vld [vmem:[#allocation2 + $0x14c] sm:$0xf]
    %v142 = vld [vmem:[#allocation2 + $0x150] sm:$0xf]
    %v143 = vld [vmem:[#allocation2 + $0x154] sm:$0xf]
    %v144 = vld [vmem:[#allocation2 + $0x158] sm:$0xf]
    %v145 = vld [vmem:[#allocation2 + $0x15c] sm:$0xf]
    %v146 = vld [vmem:[#allocation2 + $0x160] sm:$0xf]
    %v147 = vld [vmem:[#allocation2 + $0x164] sm:$0xf]
    %v148 = vld [vmem:[#allocation2 + $0x168] sm:$0xf]
    %v149 = vld [vmem:[#allocation2 + $0x16c] sm:$0xf]
    %v150 = vld [vmem:[#allocation2 + $0x170] sm:$0xf]
    %v151 = vld [vmem:[#allocation2 + $0x174] sm:$0xf]
    %v152 = vld [vmem:[#allocation2 + $0x178] sm:$0xf]
    %v153 = vld [vmem:[#allocation2 + $0x17c] sm:$0xf]
    %v154 = vld [vmem:[%s5] sm:$0x1]
    %v155 = vlaneseq
    %v156 = vshrl.u32 %v155, 7
    %v157 = vsub.s32 0, %v156
    %v158 = vrot.slane %v154, %v157
    %v162 = vunpack.c.l.b16 %v55
    %v163 = vunpack.c.h.b16 %v55
    %v164 = vunpack.c.l.b16 %v56
    %v165 = vunpack.c.h.b16 %v56
    %v166 = vunpack.c.l.b16 %v57
    %v167 = vunpack.c.h.b16 %v57
    %v168 = vpack.c.b16 %v162, %v162
    %v169 = vpack.c.b16 %v163, %v163
    %v170 = vpack.c.b16 %v164, %v164
    %v171 = vpack.c.b16 %v165, %v165
    %v172 = vpack.c.b16 %v166, %v166
    %v173 = vpack.c.b16 %v167, %v167
    %v276 = vunpack.c.l.b16 %v58
    %v277 = vunpack.c.l.b16 %v59
    %v278 = vunpack.c.l.b16 %v60
    %v279 = vunpack.c.l.b16 %v61
    %v280 = vunpack.c.l.b16 %v62
    %v281 = vunpack.c.l.b16 %v63
    %v282 = vunpack.c.l.b16 %v64
    %v283 = vunpack.c.l.b16 %v65
    %v284 = vunpack.c.l.b16 %v66
    %v285 = vunpack.c.l.b16 %v67
    %v286 = vunpack.c.l.b16 %v68
    %v287 = vunpack.c.l.b16 %v69
    %v288 = vunpack.c.l.b16 %v70
    %v289 = vunpack.c.l.b16 %v71
    %v290 = vunpack.c.l.b16 %v72
    %v291 = vunpack.c.l.b16 %v73
    %v292 = vunpack.c.l.b16 %v74
    %v293 = vunpack.c.l.b16 %v75
    %v294 = vunpack.c.l.b16 %v76
    %v295 = vunpack.c.l.b16 %v77
    %v296 = vunpack.c.l.b16 %v78
    %v297 = vunpack.c.l.b16 %v79
    %v298 = vunpack.c.l.b16 %v80
    %v299 = vunpack.c.l.b16 %v81
    %v300 = vunpack.c.l.b16 %v82
    %v301 = vunpack.c.l.b16 %v83
    %v302 = vunpack.c.l.b16 %v84
    %v303 = vunpack.c.l.b16 %v85
    %v304 = vunpack.c.l.b16 %v86
    %v305 = vunpack.c.l.b16 %v87
    %v306 = vunpack.c.l.b16 %v88
    %v307 = vunpack.c.l.b16 %v89
    %v308 = vunpack.c.l.b16 %v90
    %v309 = vunpack.c.l.b16 %v91
    %v310 = vunpack.c.l.b16 %v92
    %v311 = vunpack.c.l.b16 %v93
    %v312 = vunpack.c.l.b16 %v94
    %v313 = vunpack.c.l.b16 %v95
    %v314 = vunpack.c.l.b16 %v96
    %v315 = vunpack.c.l.b16 %v97
    %v316 = vunpack.c.l.b16 %v98
    %v317 = vunpack.c.l.b16 %v99
    %v318 = vunpack.c.l.b16 %v100
    %v319 = vunpack.c.l.b16 %v101
    %v320 = vunpack.c.l.b16 %v102
    %v321 = vunpack.c.l.b16 %v103
    %v322 = vunpack.c.l.b16 %v104
    %v323 = vunpack.c.l.b16 %v105
    %v324 = vunpack.c.l.b16 %v106
    %v325 = vunpack.c.l.b16 %v107
    %v326 = vunpack.c.l.b16 %v108
    %v327 = vunpack.c.l.b16 %v109
    %v328 = vunpack.c.l.b16 %v110
    %v329 = vunpack.c.l.b16 %v111
    %v330 = vunpack.c.l.b16 %v112
    %v331 = vunpack.c.l.b16 %v113
    %v332 = vunpack.c.l.b16 %v114
    %v333 = vunpack.c.l.b16 %v115
    %v334 = vunpack.c.l.b16 %v116
    %v335 = vunpack.c.l.b16 %v117
    %v336 = vunpack.c.l.b16 %v118
    %v337 = vunpack.c.l.b16 %v119
    %v338 = vunpack.c.l.b16 %v120
    %v339 = vunpack.c.l.b16 %v121
    %v340 = vunpack.c.l.b16 %v122
    %v341 = vunpack.c.l.b16 %v123
    %v342 = vunpack.c.l.b16 %v124
    %v343 = vunpack.c.l.b16 %v125
    %v344 = vunpack.c.l.b16 %v126
    %v345 = vunpack.c.l.b16 %v127
    %v346 = vunpack.c.l.b16 %v128
    %v347 = vunpack.c.l.b16 %v129
    %v348 = vunpack.c.l.b16 %v130
    %v349 = vunpack.c.l.b16 %v131
    %v350 = vunpack.c.l.b16 %v132
    %v351 = vunpack.c.l.b16 %v133
    %v352 = vunpack.c.l.b16 %v134
    %v353 = vunpack.c.l.b16 %v135
    %v354 = vunpack.c.l.b16 %v136
    %v355 = vunpack.c.l.b16 %v137
    %v356 = vunpack.c.l.b16 %v138
    %v357 = vunpack.c.l.b16 %v139
    %v358 = vunpack.c.l.b16 %v140
    %v359 = vunpack.c.l.b16 %v141
    %v360 = vunpack.c.l.b16 %v142
    %v361 = vunpack.c.l.b16 %v143
    %v362 = vunpack.c.l.b16 %v144
    %v363 = vunpack.c.l.b16 %v145
    %v364 = vunpack.c.l.b16 %v146
    %v365 = vunpack.c.l.b16 %v147
    %v366 = vunpack.c.l.b16 %v148
    %v367 = vunpack.c.l.b16 %v149
    %v368 = vunpack.c.l.b16 %v150
    %v369 = vunpack.c.l.b16 %v151
    %v370 = vunpack.c.l.b16 %v152
    %v371 = vunpack.c.l.b16 %v153
    %v372 = vpack.c.b16 %v277, %v276
    %v373 = vpack.c.b16 %v279, %v278
    %v374 = vpack.c.b16 %v281, %v280
    %v375 = vpack.c.b16 %v283, %v282
    %v376 = vpack.c.b16 %v285, %v284
    %v377 = vpack.c.b16 %v287, %v286
    %v378 = vpack.c.b16 %v289, %v288
    %v379 = vpack.c.b16 %v291, %v290
    %v380 = vpack.c.b16 %v293, %v292
    %v381 = vpack.c.b16 %v295, %v294
    %v382 = vpack.c.b16 %v297, %v296
    %v383 = vpack.c.b16 %v299, %v298
    %v384 = vpack.c.b16 %v301, %v300
    %v385 = vpack.c.b16 %v303, %v302
    %v386 = vpack.c.b16 %v305, %v304
    %v387 = vpack.c.b16 %v307, %v306
    %v388 = vpack.c.b16 %v309, %v308
    %v389 = vpack.c.b16 %v311, %v310
    %v390 = vpack.c.b16 %v313, %v312
    %v391 = vpack.c.b16 %v315, %v314
    %v392 = vpack.c.b16 %v317, %v316
    %v393 = vpack.c.b16 %v319, %v318
    %v394 = vpack.c.b16 %v321, %v320
    %v395 = vpack.c.b16 %v323, %v322
    %v396 = vpack.c.b16 %v325, %v324
    %v397 = vpack.c.b16 %v327, %v326
    %v398 = vpack.c.b16 %v329, %v328
    %v399 = vpack.c.b16 %v331, %v330
    %v400 = vpack.c.b16 %v333, %v332
    %v401 = vpack.c.b16 %v335, %v334
    %v402 = vpack.c.b16 %v337, %v336
    %v403 = vpack.c.b16 %v339, %v338
    %v404 = vpack.c.b16 %v341, %v340
    %v405 = vpack.c.b16 %v343, %v342
    %v406 = vpack.c.b16 %v345, %v344
    %v407 = vpack.c.b16 %v347, %v346
    %v408 = vpack.c.b16 %v349, %v348
    %v409 = vpack.c.b16 %v351, %v350
    %v410 = vpack.c.b16 %v353, %v352
    %v411 = vpack.c.b16 %v355, %v354
    %v412 = vpack.c.b16 %v357, %v356
    %v413 = vpack.c.b16 %v359, %v358
    %v414 = vpack.c.b16 %v361, %v360
    %v415 = vpack.c.b16 %v363, %v362
    %v416 = vpack.c.b16 %v365, %v364
    %v417 = vpack.c.b16 %v367, %v366
    %v418 = vpack.c.b16 %v369, %v368
    %v419 = vpack.c.b16 %v371, %v370
    %468 = vmatprep.subr.bf16.mxu0 0
    %469 = vmatpush1.bf16.msra.mxu0 %v372
    %470 = vmatprep.subr.bf16.mxu0 0
    %471 = vmatpush1.bf16.msra.mxu0 %v373
    %472 = vmatprep.subr.bf16.mxu0 0
    %473 = vmatpush1.bf16.msra.mxu0 %v374
    %474 = vmatprep.subr.bf16.mxu0 0
    %475 = vmatpush1.bf16.msra.mxu0 %v375
    %476 = vmatprep.subr.bf16.mxu0 0
    %477 = vmatpush1.bf16.msra.mxu0 %v376
    %478 = vmatprep.subr.bf16.mxu0 0
    %479 = vmatpush1.bf16.msra.mxu0 %v377
    %480 = vmatprep.subr.bf16.mxu0 0
    %481 = vmatpush1.bf16.msra.mxu0 %v378
    %482 = vmatprep.subr.bf16.mxu0 0
    %483 = vmatpush1.bf16.msra.mxu0 %v379
    %484 = vmatprep.subr.bf16.mxu0 0
    %485 = vmatpush1.bf16.msra.mxu0 %v380
    %486 = vmatprep.subr.bf16.mxu0 0
    %487 = vmatpush1.bf16.msra.mxu0 %v381
    %488 = vmatprep.subr.bf16.mxu0 0
    %489 = vmatpush1.bf16.msra.mxu0 %v382
    %490 = vmatprep.subr.bf16.mxu0 0
    %491 = vmatpush1.bf16.msra.mxu0 %v383
    %492 = vmatprep.subr.bf16.mxu0 0
    %493 = vmatpush1.bf16.msra.mxu0 %v384
    %494 = vmatprep.subr.bf16.mxu0 0
    %495 = vmatpush1.bf16.msra.mxu0 %v385
    %496 = vmatprep.subr.bf16.mxu0 0
    %497 = vmatpush1.bf16.msra.mxu0 %v386
    %498 = vmatprep.subr.bf16.mxu0 0
    %499 = vmatpush1.bf16.msra.mxu0 %v387
    %500 = vmatprep.mubr.bf16.mxu0 %v169
    %501 = vmatmul.mubr.bf16.gmra.mrb[0].mxu0 %v168
    %v502 = vpop.f32.mrb[0].mxu0
    %v503 = vadd.f32 %v158, %v502
    %v504 = vpop.f32.mrb[0].mxu0
    %v505 = vpop.f32.mrb[0].mxu0
    %v506 = vpop.f32.mrb[0].mxu0
    %507 = vdwg.mxu0
    %508 = vmatprep.subr.bf16.mxu0 0
    %509 = vmatpush1.bf16.msra.mxu0 %v388
    %510 = vmatprep.subr.bf16.mxu0 0
    %511 = vmatpush1.bf16.msra.mxu0 %v389
    %512 = vmatprep.subr.bf16.mxu0 0
    %513 = vmatpush1.bf16.msra.mxu0 %v390
    %514 = vmatprep.subr.bf16.mxu0 0
    %515 = vmatpush1.bf16.msra.mxu0 %v391
    %516 = vmatprep.subr.bf16.mxu0 0
    %517 = vmatpush1.bf16.msra.mxu0 %v392
    %518 = vmatprep.subr.bf16.mxu0 0
    %519 = vmatpush1.bf16.msra.mxu0 %v393
    %520 = vmatprep.subr.bf16.mxu0 0
    %521 = vmatpush1.bf16.msra.mxu0 %v394
    %522 = vmatprep.subr.bf16.mxu0 0
    %523 = vmatpush1.bf16.msra.mxu0 %v395
    %524 = vmatprep.subr.bf16.mxu0 0
    %525 = vmatpush1.bf16.msra.mxu0 %v396
    %526 = vmatprep.subr.bf16.mxu0 0
    %527 = vmatpush1.bf16.msra.mxu0 %v397
    %528 = vmatprep.subr.bf16.mxu0 0
    %529 = vmatpush1.bf16.msra.mxu0 %v398
    %530 = vmatprep.subr.bf16.mxu0 0
    %531 = vmatpush1.bf16.msra.mxu0 %v399
    %532 = vmatprep.subr.bf16.mxu0 0
    %533 = vmatpush1.bf16.msra.mxu0 %v400
    %534 = vmatprep.subr.bf16.mxu0 0
    %535 = vmatpush1.bf16.msra.mxu0 %v401
    %536 = vmatprep.subr.bf16.mxu0 0
    %537 = vmatpush1.bf16.msra.mxu0 %v402
    %538 = vmatprep.subr.bf16.mxu0 0
    %539 = vmatpush1.bf16.msra.mxu0 %v403
    %540 = vmatprep.mubr.bf16.mxu0 %v171
    %541 = vmatmul.mubr.bf16.gmra.mrb[0].mxu0 %v170
    %v542 = vpop.f32.mrb[0].mxu0
    %v543 = vadd.f32 %v503, %v542
    %v544 = vpop.f32.mrb[0].mxu0
    %v545 = vpop.f32.mrb[0].mxu0
    %v546 = vpop.f32.mrb[0].mxu0
    %547 = vdwg.mxu0
    %548 = vmatprep.subr.bf16.mxu0 0
    %549 = vmatpush1.bf16.msra.mxu0 %v404
    %550 = vmatprep.subr.bf16.mxu0 0
    %551 = vmatpush1.bf16.msra.mxu0 %v405
    %552 = vmatprep.subr.bf16.mxu0 0
    %553 = vmatpush1.bf16.msra.mxu0 %v406
    %554 = vmatprep.subr.bf16.mxu0 0
    %555 = vmatpush1.bf16.msra.mxu0 %v407
    %556 = vmatprep.subr.bf16.mxu0 0
    %557 = vmatpush1.bf16.msra.mxu0 %v408
    %558 = vmatprep.subr.bf16.mxu0 0
    %559 = vmatpush1.bf16.msra.mxu0 %v409
    %560 = vmatprep.subr.bf16.mxu0 0
    %561 = vmatpush1.bf16.msra.mxu0 %v410
    %562 = vmatprep.subr.bf16.mxu0 0
    %563 = vmatpush1.bf16.msra.mxu0 %v411
    %564 = vmatprep.subr.bf16.mxu0 0
    %565 = vmatpush1.bf16.msra.mxu0 %v412
    %566 = vmatprep.subr.bf16.mxu0 0
    %567 = vmatpush1.bf16.msra.mxu0 %v413
    %568 = vmatprep.subr.bf16.mxu0 0
    %569 = vmatpush1.bf16.msra.mxu0 %v414
    %570 = vmatprep.subr.bf16.mxu0 0
    %571 = vmatpush1.bf16.msra.mxu0 %v415
    %572 = vmatprep.subr.bf16.mxu0 0
    %573 = vmatpush1.bf16.msra.mxu0 %v416
    %574 = vmatprep.subr.bf16.mxu0 0
    %575 = vmatpush1.bf16.msra.mxu0 %v417
    %576 = vmatprep.subr.bf16.mxu0 0
    %577 = vmatpush1.bf16.msra.mxu0 %v418
    %578 = vmatprep.subr.bf16.mxu0 0
    %579 = vmatpush1.bf16.msra.mxu0 %v419
    %580 = vmatprep.mubr.bf16.mxu0 %v173
    %581 = vmatmul.mubr.bf16.gmra.mrb[0].mxu0 %v172
    %v582 = vpop.f32.mrb[0].mxu0
    %v583 = vadd.f32 %v543, %v582
    %v584 = vpop.f32.mrb[0].mxu0
    %v585 = vpop.f32.mrb[0].mxu0
    %v586 = vpop.f32.mrb[0].mxu0
    %587 = vdwg.mxu0
    %v588 = vmax.f32 %v583, 0.0
    %v589 = vpack.c.bf16 %v588, %v588
    %v590 = vld [vmem:[%s2] sm:$0xf]
    %v591 = vld [vmem:[%s2 + $0x4] sm:$0xf]
    %v592 = vld [vmem:[%s2 + $0x8] sm:$0xf]
    %v593 = vld [vmem:[%s2 + $0xc] sm:$0xf]
    %v594 = vld [vmem:[%s2 + $0x10] sm:$0xf]
    %v595 = vld [vmem:[%s2 + $0x14] sm:$0xf]
    %v596 = vld [vmem:[%s2 + $0x18] sm:$0xf]
    %v597 = vld [vmem:[%s2 + $0x1c] sm:$0xf]
    %v598 = vld [vmem:[%s2 + $0x20] sm:$0xf]
    %v599 = vld [vmem:[%s2 + $0x24] sm:$0xf]
    %v600 = vld [vmem:[%s2 + $0x28] sm:$0xf]
    %v601 = vld [vmem:[%s2 + $0x2c] sm:$0xf]
    %v602 = vld [vmem:[%s2 + $0x30] sm:$0xf]
    %v603 = vld [vmem:[%s2 + $0x34] sm:$0xf]
    %v604 = vld [vmem:[%s2 + $0x38] sm:$0xf]
    %v605 = vld [vmem:[%s2 + $0x3c] sm:$0xf]
    %v606 = vld [vmem:[%s5 + $0x1] sm:$0x1]
    %v607 = vlaneseq
    %v608 = vshrl.u32 %v607, 7
    %v609 = vsub.s32 0, %v608
    %v610 = vrot.slane %v606, %v609
    %v627 = vunpack.c.l.b16 %v590
    %v628 = vunpack.c.l.b16 %v591
    %v629 = vunpack.c.l.b16 %v592
    %v630 = vunpack.c.l.b16 %v593
    %v631 = vunpack.c.l.b16 %v594
    %v632 = vunpack.c.l.b16 %v595
    %v633 = vunpack.c.l.b16 %v596
    %v634 = vunpack.c.l.b16 %v597
    %v635 = vunpack.c.l.b16 %v598
    %v636 = vunpack.c.l.b16 %v599
    %v637 = vunpack.c.l.b16 %v600
    %v638 = vunpack.c.l.b16 %v601
    %v639 = vunpack.c.l.b16 %v602
    %v640 = vunpack.c.l.b16 %v603
    %v641 = vunpack.c.l.b16 %v604
    %v642 = vunpack.c.l.b16 %v605
    %v643 = vpack.c.b16 %v628, %v627
    %v644 = vpack.c.b16 %v630, %v629
    %v645 = vpack.c.b16 %v632, %v631
    %v646 = vpack.c.b16 %v634, %v633
    %v647 = vpack.c.b16 %v636, %v635
    %v648 = vpack.c.b16 %v638, %v637
    %v649 = vpack.c.b16 %v640, %v639
    %v650 = vpack.c.b16 %v642, %v641
    %659 = vmatprep.subr.bf16.mxu0 0
    %660 = vmatpush1.bf16.msra.mxu0 %v643
    %661 = vmatprep.subr.bf16.mxu0 0
    %662 = vmatpush1.bf16.msra.mxu0 %v644
    %663 = vmatprep.subr.bf16.mxu0 0
    %664 = vmatpush1.bf16.msra.mxu0 %v645
    %665 = vmatprep.subr.bf16.mxu0 0
    %666 = vmatpush1.bf16.msra.mxu0 %v646
    %667 = vmatprep.subr.bf16.mxu0 0
    %668 = vmatpush1.bf16.msra.mxu0 %v647
    %669 = vmatprep.subr.bf16.mxu0 0
    %670 = vmatpush1.bf16.msra.mxu0 %v648
    %671 = vmatprep.subr.bf16.mxu0 0
    %672 = vmatpush1.bf16.msra.mxu0 %v649
    %673 = vmatprep.subr.bf16.mxu0 0
    %674 = vmatpush1.bf16.msra.mxu0 %v650
    %675 = vmatprep.subr.bf16.mxu0 0
    %676 = vmatpush1.bf16.msra.mxu0 0
    %677 = vmatprep.subr.bf16.mxu0 0
    %678 = vmatpush1.bf16.msra.mxu0 0
    %679 = vmatprep.subr.bf16.mxu0 0
    %680 = vmatpush1.bf16.msra.mxu0 0
    %681 = vmatprep.subr.bf16.mxu0 0
    %682 = vmatpush1.bf16.msra.mxu0 0
    %683 = vmatprep.subr.bf16.mxu0 0
    %684 = vmatpush1.bf16.msra.mxu0 0
    %685 = vmatprep.subr.bf16.mxu0 0
    %686 = vmatpush1.bf16.msra.mxu0 0
    %687 = vmatprep.subr.bf16.mxu0 0
    %688 = vmatpush1.bf16.msra.mxu0 0
    %689 = vmatprep.subr.bf16.mxu0 0
    %690 = vmatpush1.bf16.msra.mxu0 0
    %691 = vmatprep.mubr.bf16.mxu0 0
    %692 = vmatmul.mubr.bf16.gmra.mrb[0].mxu0 %v589
    %v693 = vpop.f32.mrb[0].mxu0
    %v694 = vadd.f32 %v610, %v693
    %v695 = vpop.f32.mrb[0].mxu0
    %v696 = vpop.f32.mrb[0].mxu0
    %v697 = vpop.f32.mrb[0].mxu0
    %698 = vdwg.mxu0
    %v699 = vmax.f32 %v694, 0.0
    %v700 = vpack.c.bf16 %v699, %v699
    %v701 = vld [vmem:[%s3] sm:$0xf]
    %v702 = vld [vmem:[%s3 + $0x4] sm:$0xf]
    %v703 = vld [vmem:[%s3 + $0x8] sm:$0xf]
    %v704 = vld [vmem:[%s3 + $0xc] sm:$0xf]
    %v705 = vld [vmem:[%s3 + $0x10] sm:$0xf]
    %v706 = vld [vmem:[%s3 + $0x14] sm:$0xf]
    %v707 = vld [vmem:[%s3 + $0x18] sm:$0xf]
    %v708 = vld [vmem:[%s3 + $0x1c] sm:$0xf]
    %v709 = vld [vmem:[%s3 + $0x20] sm:$0xf]
    %v710 = vld [vmem:[%s3 + $0x24] sm:$0xf]
    %v711 = vld [vmem:[%s3 + $0x28] sm:$0xf]
    %v712 = vld [vmem:[%s3 + $0x2c] sm:$0xf]
    %v713 = vld [vmem:[%s3 + $0x30] sm:$0xf]
    %v714 = vld [vmem:[%s3 + $0x34] sm:$0xf]
    %v715 = vld [vmem:[%s3 + $0x38] sm:$0xf]
    %v716 = vld [vmem:[%s3 + $0x3c] sm:$0xf]
    %v717 = vld [vmem:[%s5 + $0x2] sm:$0x1]
    %v718 = vlaneseq
    %v719 = vshrl.u32 %v718, 7
    %v720 = vsub.s32 0, %v719
    %v721 = vrot.slane %v717, %v720
    %v738 = vunpack.c.l.b16 %v701
    %v739 = vunpack.c.l.b16 %v702
    %v740 = vunpack.c.l.b16 %v703
    %v741 = vunpack.c.l.b16 %v704
    %v742 = vunpack.c.l.b16 %v705
    %v743 = vunpack.c.l.b16 %v706
    %v744 = vunpack.c.l.b16 %v707
    %v745 = vunpack.c.l.b16 %v708
    %v746 = vunpack.c.l.b16 %v709
    %v747 = vunpack.c.l.b16 %v710
    %v748 = vunpack.c.l.b16 %v711
    %v749 = vunpack.c.l.b16 %v712
    %v750 = vunpack.c.l.b16 %v713
    %v751 = vunpack.c.l.b16 %v714
    %v752 = vunpack.c.l.b16 %v715
    %v753 = vunpack.c.l.b16 %v716
    %v754 = vpack.c.b16 %v739, %v738
    %v755 = vpack.c.b16 %v741, %v740
    %v756 = vpack.c.b16 %v743, %v742
    %v757 = vpack.c.b16 %v745, %v744
    %v758 = vpack.c.b16 %v747, %v746
    %v759 = vpack.c.b16 %v749, %v748
    %v760 = vpack.c.b16 %v751, %v750
    %v761 = vpack.c.b16 %v753, %v752
    %770 = vmatprep.subr.bf16.mxu0 0
    %771 = vmatpush1.bf16.msra.mxu0 %v754
    %772 = vmatprep.subr.bf16.mxu0 0
    %773 = vmatpush1.bf16.msra.mxu0 %v755
    %774 = vmatprep.subr.bf16.mxu0 0
    %775 = vmatpush1.bf16.msra.mxu0 %v756
    %776 = vmatprep.subr.bf16.mxu0 0
    %777 = vmatpush1.bf16.msra.mxu0 %v757
    %778 = vmatprep.subr.bf16.mxu0 0
    %779 = vmatpush1.bf16.msra.mxu0 %v758
    %780 = vmatprep.subr.bf16.mxu0 0
    %781 = vmatpush1.bf16.msra.mxu0 %v759
    %782 = vmatprep.subr.bf16.mxu0 0
    %783 = vmatpush1.bf16.msra.mxu0 %v760
    %784 = vmatprep.subr.bf16.mxu0 0
    %785 = vmatpush1.bf16.msra.mxu0 %v761
    %786 = vmatprep.subr.bf16.mxu0 0
    %787 = vmatpush1.bf16.msra.mxu0 0
    %788 = vmatprep.subr.bf16.mxu0 0
    %789 = vmatpush1.bf16.msra.mxu0 0
    %790 = vmatprep.subr.bf16.mxu0 0
    %791 = vmatpush1.bf16.msra.mxu0 0
    %792 = vmatprep.subr.bf16.mxu0 0
    %793 = vmatpush1.bf16.msra.mxu0 0
    %794 = vmatprep.subr.bf16.mxu0 0
    %795 = vmatpush1.bf16.msra.mxu0 0
    %796 = vmatprep.subr.bf16.mxu0 0
    %797 = vmatpush1.bf16.msra.mxu0 0
    %798 = vmatprep.subr.bf16.mxu0 0
    %799 = vmatpush1.bf16.msra.mxu0 0
    %800 = vmatprep.subr.bf16.mxu0 0
    %801 = vmatpush1.bf16.msra.mxu0 0
    %802 = vmatprep.mubr.bf16.mxu0 0
    %803 = vmatmul.mubr.bf16.gmra.mrb[0].mxu0 %v700
    %v804 = vpop.f32.mrb[0].mxu0
    %v805 = vadd.f32 %v721, %v804
    %v806 = vpop.f32.mrb[0].mxu0
    %v807 = vpop.f32.mrb[0].mxu0
    %v808 = vpop.f32.mrb[0].mxu0
    %809 = vdwg.mxu0
    %v810 = vmax.f32 %v805, 0.0
    %v811 = vpack.c.bf16 %v810, %v810
    %v812 = vld [vmem:[#allocation4] sm:$0xff]
    %v813 = vld [vmem:[#allocation4 + $0x8] sm:$0xff]
    %v814 = vld [vmem:[#allocation4 + $0x10] sm:$0xff]
    %v815 = vld [vmem:[#allocation4 + $0x18] sm:$0xff]
    %v816 = vld [vmem:[#allocation4 + $0x20] sm:$0xff]
    %v817 = vld [vmem:[#allocation4 + $0x28] sm:$0xff]
    %v818 = vld [vmem:[#allocation4 + $0x30] sm:$0xff]
    %v819 = vld [vmem:[#allocation4 + $0x38] sm:$0xff]
    %v820 = vld [vmem:[#allocation4 + $0x40] sm:$0xff]
    %v821 = vld [vmem:[#allocation4 + $0x48] sm:$0xff]
    %v822 = vld [vmem:[#allocation4 + $0x50] sm:$0xff]
    %v823 = vld [vmem:[#allocation4 + $0x58] sm:$0xff]
    %v824 = vld [vmem:[#allocation4 + $0x60] sm:$0xff]
    %v825 = vld [vmem:[#allocation4 + $0x68] sm:$0xff]
    %v826 = vld [vmem:[#allocation4 + $0x70] sm:$0xff]
    %v827 = vld [vmem:[#allocation4 + $0x78] sm:$0xff]
    %v828 = vld [vmem:[#allocation4 + $0x80] sm:$0xff]
    %v829 = vld [vmem:[#allocation4 + $0x88] sm:$0xff]
    %v830 = vld [vmem:[#allocation4 + $0x90] sm:$0xff]
    %v831 = vld [vmem:[#allocation4 + $0x98] sm:$0xff]
    %v832 = vld [vmem:[#allocation4 + $0xa0] sm:$0xff]
    %v833 = vld [vmem:[#allocation4 + $0xa8] sm:$0xff]
    %v834 = vld [vmem:[#allocation4 + $0xb0] sm:$0xff]
    %v835 = vld [vmem:[#allocation4 + $0xb8] sm:$0xff]
    %v836 = vld [vmem:[#allocation4 + $0xc0] sm:$0xff]
    %v837 = vld [vmem:[#allocation4 + $0xc8] sm:$0xff]
    %v838 = vld [vmem:[#allocation4 + $0xd0] sm:$0xff]
    %v839 = vld [vmem:[#allocation4 + $0xd8] sm:$0xff]
    %v840 = vld [vmem:[#allocation4 + $0xe0] sm:$0xff]
    %v841 = vld [vmem:[#allocation4 + $0xe8] sm:$0xff]
    %v842 = vld [vmem:[#allocation4 + $0xf0] sm:$0xff]
    %v843 = vld [vmem:[#allocation4 + $0xf8] sm:$0xff]
    %v844 = vld [vmem:[#allocation4 + $0x100] sm:$0xff]
    %v845 = vld [vmem:[#allocation4 + $0x108] sm:$0xff]
    %v846 = vld [vmem:[#allocation4 + $0x110] sm:$0xff]
    %v847 = vld [vmem:[#allocation4 + $0x118] sm:$0xff]
    %v848 = vld [vmem:[#allocation4 + $0x120] sm:$0xff]
    %v849 = vld [vmem:[#allocation4 + $0x128] sm:$0xff]
    %v850 = vld [vmem:[#allocation4 + $0x130] sm:$0xff]
    %v851 = vld [vmem:[#allocation4 + $0x138] sm:$0xff]
    %v852 = vld [vmem:[#allocation4 + $0x140] sm:$0xff]
    %v853 = vld [vmem:[#allocation4 + $0x148] sm:$0xff]
    %v854 = vld [vmem:[#allocation4 + $0x150] sm:$0xff]
    %v855 = vld [vmem:[#allocation4 + $0x158] sm:$0xff]
    %v856 = vld [vmem:[#allocation4 + $0x160] sm:$0xff]
    %v857 = vld [vmem:[#allocation4 + $0x168] sm:$0xff]
    %v858 = vld [vmem:[#allocation4 + $0x170] sm:$0xff]
    %v859 = vld [vmem:[#allocation4 + $0x178] sm:$0xff]
    %v860 = vld [vmem:[%s6] sm:$0x3f]
    %v862 = vlaneseq
    %v863 = vshrl.u32 %v862, 7
    %v864 = vsub.s32 0, %v863
    %v865 = vrot.slane %v860, %v864
    %v866 = vlaneseq
    %v867 = vshrl.u32 %v866, 7
    %v868 = vsub.s32 1, %v867
    %v869 = vrot.slane %v860, %v868
    %v870 = vlaneseq
    %v871 = vshrl.u32 %v870, 7
    %v872 = vsub.s32 2, %v871
    %v873 = vrot.slane %v860, %v872
    %v874 = vlaneseq
    %v875 = vshrl.u32 %v874, 7
    %v876 = vsub.s32 3, %v875
    %v877 = vrot.slane %v860, %v876
    %v878 = vlaneseq
    %v879 = vshrl.u32 %v878, 7
    %v880 = vsub.s32 4, %v879
    %v881 = vrot.slane %v860, %v880
    %v882 = vlaneseq
    %v883 = vshrl.u32 %v882, 7
    %v884 = vsub.s32 5, %v883
    %v885 = vrot.slane %v860, %v884
    %v940 = vunpack.c.l.b16 %v812
    %v941 = vunpack.c.h.b16 %v812
    %v942 = vunpack.c.l.b16 %v813
    %v943 = vunpack.c.h.b16 %v813
    %v944 = vunpack.c.l.b16 %v814
    %v945 = vunpack.c.h.b16 %v814
    %v946 = vunpack.c.l.b16 %v815
    %v947 = vunpack.c.h.b16 %v815
    %v948 = vunpack.c.l.b16 %v816
    %v949 = vunpack.c.h.b16 %v816
    %v950 = vunpack.c.l.b16 %v817
    %v951 = vunpack.c.h.b16 %v817
    %v952 = vunpack.c.l.b16 %v818
    %v953 = vunpack.c.h.b16 %v818
    %v954 = vunpack.c.l.b16 %v819
    %v955 = vunpack.c.h.b16 %v819
    %v956 = vunpack.c.l.b16 %v820
    %v957 = vunpack.c.h.b16 %v820
    %v958 = vunpack.c.l.b16 %v821
    %v959 = vunpack.c.h.b16 %v821
    %v960 = vunpack.c.l.b16 %v822
    %v961 = vunpack.c.h.b16 %v822
    %v962 = vunpack.c.l.b16 %v823
    %v963 = vunpack.c.h.b16 %v823
    %v964 = vunpack.c.l.b16 %v824
    %v965 = vunpack.c.h.b16 %v824
    %v966 = vunpack.c.l.b16 %v825
    %v967 = vunpack.c.h.b16 %v825
    %v968 = vunpack.c.l.b16 %v826
    %v969 = vunpack.c.h.b16 %v826
    %v970 = vunpack.c.l.b16 %v827
    %v971 = vunpack.c.h.b16 %v827
    %v972 = vunpack.c.l.b16 %v828
    %v973 = vunpack.c.h.b16 %v828
    %v974 = vunpack.c.l.b16 %v829
    %v975 = vunpack.c.h.b16 %v829
    %v976 = vunpack.c.l.b16 %v830
    %v977 = vunpack.c.h.b16 %v830
    %v978 = vunpack.c.l.b16 %v831
    %v979 = vunpack.c.h.b16 %v831
    %v980 = vunpack.c.l.b16 %v832
    %v981 = vunpack.c.h.b16 %v832
    %v982 = vunpack.c.l.b16 %v833
    %v983 = vunpack.c.h.b16 %v833
    %v984 = vunpack.c.l.b16 %v834
    %v985 = vunpack.c.h.b16 %v834
    %v986 = vunpack.c.l.b16 %v835
    %v987 = vunpack.c.h.b16 %v835
    %v988 = vunpack.c.l.b16 %v836
    %v989 = vunpack.c.h.b16 %v836
    %v990 = vunpack.c.l.b16 %v837
    %v991 = vunpack.c.h.b16 %v837
    %v992 = vunpack.c.l.b16 %v838
    %v993 = vunpack.c.h.b16 %v838
    %v994 = vunpack.c.l.b16 %v839
    %v995 = vunpack.c.h.b16 %v839
    %v996 = vunpack.c.l.b16 %v840
    %v997 = vunpack.c.h.b16 %v840
    %v998 = vunpack.c.l.b16 %v841
    %v999 = vunpack.c.h.b16 %v841
    %v1000 = vunpack.c.l.b16 %v842
    %v1001 = vunpack.c.h.b16 %v842
    %v1002 = vunpack.c.l.b16 %v843
    %v1003 = vunpack.c.h.b16 %v843
    %v1004 = vunpack.c.l.b16 %v844
    %v1005 = vunpack.c.h.b16 %v844
    %v1006 = vunpack.c.l.b16 %v845
    %v1007 = vunpack.c.h.b16 %v845
    %v1008 = vunpack.c.l.b16 %v846
    %v1009 = vunpack.c.h.b16 %v846
    %v1010 = vunpack.c.l.b16 %v847
    %v1011 = vunpack.c.h.b16 %v847
    %v1012 = vunpack.c.l.b16 %v848
    %v1013 = vunpack.c.h.b16 %v848
    %v1014 = vunpack.c.l.b16 %v849
    %v1015 = vunpack.c.h.b16 %v849
    %v1016 = vunpack.c.l.b16 %v850
    %v1017 = vunpack.c.h.b16 %v850
    %v1018 = vunpack.c.l.b16 %v851
    %v1019 = vunpack.c.h.b16 %v851
    %v1020 = vunpack.c.l.b16 %v852
    %v1021 = vunpack.c.h.b16 %v852
    %v1022 = vunpack.c.l.b16 %v853
    %v1023 = vunpack.c.h.b16 %v853
    %v1024 = vunpack.c.l.b16 %v854
    %v1025 = vunpack.c.h.b16 %v854
    %v1026 = vunpack.c.l.b16 %v855
    %v1027 = vunpack.c.h.b16 %v855
    %v1028 = vunpack.c.l.b16 %v856
    %v1029 = vunpack.c.h.b16 %v856
    %v1030 = vunpack.c.l.b16 %v857
    %v1031 = vunpack.c.h.b16 %v857
    %v1032 = vunpack.c.l.b16 %v858
    %v1033 = vunpack.c.h.b16 %v858
    %v1034 = vunpack.c.l.b16 %v859
    %v1035 = vunpack.c.h.b16 %v859
    %v1036 = vpack.c.b16 %v946, %v940
    %v1037 = vpack.c.b16 %v947, %v941
    %v1038 = vpack.c.b16 %v948, %v942
    %v1039 = vpack.c.b16 %v949, %v943
    %v1040 = vpack.c.b16 %v950, %v944
    %v1041 = vpack.c.b16 %v951, %v945
    %v1042 = vpack.c.b16 %v958, %v952
    %v1043 = vpack.c.b16 %v959, %v953
    %v1044 = vpack.c.b16 %v960, %v954
    %v1045 = vpack.c.b16 %v961, %v955
    %v1046 = vpack.c.b16 %v962, %v956
    %v1047 = vpack.c.b16 %v963, %v957
    %v1048 = vpack.c.b16 %v970, %v964
    %v1049 = vpack.c.b16 %v971, %v965
    %v1050 = vpack.c.b16 %v972, %v966
    %v1051 = vpack.c.b16 %v973, %v967
    %v1052 = vpack.c.b16 %v974, %v968
    %v1053 = vpack.c.b16 %v975, %v969
    %v1054 = vpack.c.b16 %v982, %v976
    %v1055 = vpack.c.b16 %v983, %v977
    %v1056 = vpack.c.b16 %v984, %v978
    %v1057 = vpack.c.b16 %v985, %v979
    %v1058 = vpack.c.b16 %v986, %v980
    %v1059 = vpack.c.b16 %v987, %v981
    %v1060 = vpack.c.b16 %v994, %v988
    %v1061 = vpack.c.b16 %v995, %v989
    %v1062 = vpack.c.b16 %v996, %v990
    %v1063 = vpack.c.b16 %v997, %v991
    %v1064 = vpack.c.b16 %v998, %v992
    %v1065 = vpack.c.b16 %v999, %v993
    %v1066 = vpack.c.b16 %v1006, %v1000
    %v1067 = vpack.c.b16 %v1007, %v1001
    %v1068 = vpack.c.b16 %v1008, %v1002
    %v1069 = vpack.c.b16 %v1009, %v1003
    %v1070 = vpack.c.b16 %v1010, %v1004
    %v1071 = vpack.c.b16 %v1011, %v1005
    %v1072 = vpack.c.b16 %v1018, %v1012
    %v1073 = vpack.c.b16 %v1019, %v1013
    %v1074 = vpack.c.b16 %v1020, %v1014
    %v1075 = vpack.c.b16 %v1021, %v1015
    %v1076 = vpack.c.b16 %v1022, %v1016
    %v1077 = vpack.c.b16 %v1023, %v1017
    %v1078 = vpack.c.b16 %v1030, %v1024
    %v1079 = vpack.c.b16 %v1031, %v1025
    %v1080 = vpack.c.b16 %v1032, %v1026
    %v1081 = vpack.c.b16 %v1033, %v1027
    %v1082 = vpack.c.b16 %v1034, %v1028
    %v1083 = vpack.c.b16 %v1035, %v1029
    %1132 = vmatprep.subr.bf16.mxu0 %v1037
    %1133 = vmatpush1.bf16.msra.mxu0 %v1036
    %1134 = vmatprep.subr.bf16.mxu0 %v1043
    %1135 = vmatpush1.bf16.msra.mxu0 %v1042
    %1136 = vmatprep.subr.bf16.mxu0 %v1049
    %1137 = vmatpush1.bf16.msra.mxu0 %v1048
    %1138 = vmatprep.subr.bf16.mxu0 %v1055
    %1139 = vmatpush1.bf16.msra.mxu0 %v1054
    %1140 = vmatprep.subr.bf16.mxu0 %v1061
    %1141 = vmatpush1.bf16.msra.mxu0 %v1060
    %1142 = vmatprep.subr.bf16.mxu0 %v1067
    %1143 = vmatpush1.bf16.msra.mxu0 %v1066
    %1144 = vmatprep.subr.bf16.mxu0 %v1073
    %1145 = vmatpush1.bf16.msra.mxu0 %v1072
    %1146 = vmatprep.subr.bf16.mxu0 %v1079
    %1147 = vmatpush1.bf16.msra.mxu0 %v1078
    %1148 = vmatprep.subr.bf16.mxu0 0
    %1149 = vmatpush1.bf16.msra.mxu0 0
    %1150 = vmatprep.subr.bf16.mxu0 0
    %1151 = vmatpush1.bf16.msra.mxu0 0
    %1152 = vmatprep.subr.bf16.mxu0 0
    %1153 = vmatpush1.bf16.msra.mxu0 0
    %1154 = vmatprep.subr.bf16.mxu0 0
    %1155 = vmatpush1.bf16.msra.mxu0 0
    %1156 = vmatprep.subr.bf16.mxu0 0
    %1157 = vmatpush1.bf16.msra.mxu0 0
    %1158 = vmatprep.subr.bf16.mxu0 0
    %1159 = vmatpush1.bf16.msra.mxu0 0
    %1160 = vmatprep.subr.bf16.mxu0 0
    %1161 = vmatpush1.bf16.msra.mxu0 0
    %1162 = vmatprep.subr.bf16.mxu0 0
    %1163 = vmatpush1.bf16.msra.mxu0 0
    %1164 = vmatprep.mubr.bf16.mxu0 0
    %1165 = vmatmul.mubr.bf16.gmra.mrb[0].mxu0 %v811
    %v1166 = vpop.f32.mrb[0].mxu0
    %v1167 = vadd.f32 %v865, %v1166
    %v1168 = vpop.f32.mrb[0].mxu0
    %v1169 = vadd.f32 %v869, %v1168
    %v1170 = vpop.f32.mrb[0].mxu0
    %v1171 = vpop.f32.mrb[0].mxu0
    %1172 = vdwg.mxu0
    %1173 = vmatprep.subr.bf16.mxu0 %v1039
    %1174 = vmatpush1.bf16.msra.mxu0 %v1038
    %1175 = vmatprep.subr.bf16.mxu0 %v1045
    %1176 = vmatpush1.bf16.msra.mxu0 %v1044
    %1177 = vmatprep.subr.bf16.mxu0 %v1051
    %1178 = vmatpush1.bf16.msra.mxu0 %v1050
    %1179 = vmatprep.subr.bf16.mxu0 %v1057
    %1180 = vmatpush1.bf16.msra.mxu0 %v1056
    %1181 = vmatprep.subr.bf16.mxu0 %v1063
    %1182 = vmatpush1.bf16.msra.mxu0 %v1062
    %1183 = vmatprep.subr.bf16.mxu0 %v1069
    %1184 = vmatpush1.bf16.msra.mxu0 %v1068
    %1185 = vmatprep.subr.bf16.mxu0 %v1075
    %1186 = vmatpush1.bf16.msra.mxu0 %v1074
    %1187 = vmatprep.subr.bf16.mxu0 %v1081
    %1188 = vmatpush1.bf16.msra.mxu0 %v1080
    %1189 = vmatprep.subr.bf16.mxu0 0
    %1190 = vmatpush1.bf16.msra.mxu0 0
    %1191 = vmatprep.subr.bf16.mxu0 0
    %1192 = vmatpush1.bf16.msra.mxu0 0
    %1193 = vmatprep.subr.bf16.mxu0 0
    %1194 = vmatpush1.bf16.msra.mxu0 0
    %1195 = vmatprep.subr.bf16.mxu0 0
    %1196 = vmatpush1.bf16.msra.mxu0 0
    %1197 = vmatprep.subr.bf16.mxu0 0
    %1198 = vmatpush1.bf16.msra.mxu0 0
    %1199 = vmatprep.subr.bf16.mxu0 0
    %1200 = vmatpush1.bf16.msra.mxu0 0
    %1201 = vmatprep.subr.bf16.mxu0 0
    %1202 = vmatpush1.bf16.msra.mxu0 0
    %1203 = vmatprep.subr.bf16.mxu0 0
    %1204 = vmatpush1.bf16.msra.mxu0 0
    %1205 = vmatprep.mubr.bf16.mxu0 0
    %1206 = vmatmul.mubr.bf16.gmra.mrb[0].mxu0 %v811
    %v1207 = vpop.f32.mrb[0].mxu0
    %v1208 = vadd.f32 %v873, %v1207
    %v1209 = vpop.f32.mrb[0].mxu0
    %v1210 = vadd.f32 %v877, %v1209
    %v1211 = vpop.f32.mrb[0].mxu0
    %v1212 = vpop.f32.mrb[0].mxu0
    %1213 = vdwg.mxu0
    %1214 = vmatprep.subr.bf16.mxu0 %v1041
    %1215 = vmatpush1.bf16.msra.mxu0 %v1040
    %1216 = vmatprep.subr.bf16.mxu0 %v1047
    %1217 = vmatpush1.bf16.msra.mxu0 %v1046
    %1218 = vmatprep.subr.bf16.mxu0 %v1053
    %1219 = vmatpush1.bf16.msra.mxu0 %v1052
    %1220 = vmatprep.subr.bf16.mxu0 %v1059
    %1221 = vmatpush1.bf16.msra.mxu0 %v1058
    %1222 = vmatprep.subr.bf16.mxu0 %v1065
    %1223 = vmatpush1.bf16.msra.mxu0 %v1064
    %1224 = vmatprep.subr.bf16.mxu0 %v1071
    %1225 = vmatpush1.bf16.msra.mxu0 %v1070
    %1226 = vmatprep.subr.bf16.mxu0 %v1077
    %1227 = vmatpush1.bf16.msra.mxu0 %v1076
    %1228 = vmatprep.subr.bf16.mxu0 %v1083
    %1229 = vmatpush1.bf16.msra.mxu0 %v1082
    %1230 = vmatprep.subr.bf16.mxu0 0
    %1231 = vmatpush1.bf16.msra.mxu0 0
    %1232 = vmatprep.subr.bf16.mxu0 0
    %1233 = vmatpush1.bf16.msra.mxu0 0
    %1234 = vmatprep.subr.bf16.mxu0 0
    %1235 = vmatpush1.bf16.msra.mxu0 0
    %1236 = vmatprep.subr.bf16.mxu0 0
    %1237 = vmatpush1.bf16.msra.mxu0 0
    %1238 = vmatprep.subr.bf16.mxu0 0
    %1239 = vmatpush1.bf16.msra.mxu0 0
    %1240 = vmatprep.subr.bf16.mxu0 0
    %1241 = vmatpush1.bf16.msra.mxu0 0
    %1242 = vmatprep.subr.bf16.mxu0 0
    %1243 = vmatpush1.bf16.msra.mxu0 0
    %1244 = vmatprep.subr.bf16.mxu0 0
    %1245 = vmatpush1.bf16.msra.mxu0 0
    %1246 = vmatprep.mubr.bf16.mxu0 0
    %1247 = vmatmul.mubr.bf16.gmra.mrb[0].mxu0 %v811
    %v1248 = vpop.f32.mrb[0].mxu0
    %v1249 = vadd.f32 %v881, %v1248
    %v1250 = vpop.f32.mrb[0].mxu0
    %v1251 = vadd.f32 %v885, %v1250
    %v1252 = vpop.f32.mrb[0].mxu0
    %v1253 = vpop.f32.mrb[0].mxu0
    %1254 = vdwg.mxu0
    %v1255 = vmax.f32 %v1167, 0.0
    %v1256 = vmax.f32 %v1169, 0.0
    %v1257 = vmax.f32 %v1208, 0.0
    %v1258 = vmax.f32 %v1210, 0.0
    %v1259 = vmax.f32 %v1249, 0.0
    %v1260 = vmax.f32 %v1251, 0.0
    %1261 = vst [vmem:[%s7] sm:$0xff] %v1255
    %1262 = vst [vmem:[%s7 + $0x8] sm:$0xff] %v1256
    %1263 = vst [vmem:[%s7 + $0x10] sm:$0xff] %v1257
    %1264 = vst [vmem:[%s7 + $0x18] sm:$0xff] %v1258
    %1265 = vst [vmem:[%s7 + $0x20] sm:$0xff] %v1259
    %1266 = vst [vmem:[%s7 + $0x28] sm:$0xff] %v1260
    // Predicated region
    $region38: #{_forward_impl.1} parent=1 // pred_check
      _
    $region39: #{_forward_impl.1} parent=1 // pred_check_branch
      %1268 = sbr.rel (0) target = $region41
    $region40: #{_forward_impl.1} parent=1 // pred_region
      _
    $region41: #{_forward_impl.1} parent=1 // pred_fallthru
      _
    // Predicated region
    $region42: #{_forward_impl.1} parent=1 // pred_check
      _
    $region43: #{_forward_impl.1} parent=1 // pred_check_branch
      %1270 = sbr.rel (0) target = $region45
    $region44: #{_forward_impl.1} parent=1 // pred_region
      _
    $region45: #{_forward_impl.1} parent=1 // pred_fallthru
      _
    %1271 = vsyncpa [#allocation3], 1
    %1272 = vsyncpa [#allocation5], 1

// kernel: _forward_impl.1
$region0: #{_forward_impl.1}
  #allocation0 [shape = 'u32[]', space=smem, size = 0x4, offset = 0x4, fixed_abs, tag = 'smem constant byte address 0x4 - core index']
  #allocation1 [shape = 'u32[144,128]{1,0:T(1,128)}', space=vmem, size = 0x12000, scoped, tag = 'internal scratch']
  %s0 = inlined_call_operand.vmem [shape: bf16[8,768], index: 0, kind: input, shape index: {}]
  %s1 = inlined_call_operand.hbm [shape: bf16[768,128], index: 1, kind: input, shape index: {}]
  %s2 = inlined_call_operand.vmem [shape: bf16[128,128], index: 2, kind: input, shape index: {}]
  %s3 = inlined_call_operand.vmem [shape: bf16[128,128], index: 3, kind: input, shape index: {}]
  %s4 = inlined_call_operand.hbm [shape: bf16[128,768], index: 4, kind: input, shape index: {}]
  %s5 = inlined_call_operand.vmem [shape: f32[8,128], index: 5, kind: input, shape index: {}]
  %s6 = inlined_call_operand.vmem [shape: f32[1,768], index: 6, kind: input, shape index: {}]
  %s7 = inlined_call_operand.vmem [shape: f32[8,768], index: 7, kind: output, shape index: {}]
  %s8 = sld [smem:[#allocation0]]
  $region46: #{_forward_impl.1} parent=0
    _
  %s10 = ssub.s32 1, %s8
  %s11 = scalar_select 0, %s10, %s8
  $region1: #{_forward_impl.1} parent=0
    #allocation2 [shape = 'u8[196608]{0}', space=vmem, size = 0x30000, scoped, tag = 'input window, operand 1, single buffered']
    #allocation3 [shape = 's32[1]{0}', space=sflag, size = 0x4, scoped, tag = 'scoped memory for _forward_impl.1']
    #allocation4 [shape = 'u8[196608]{0}', space=vmem, size = 0x30000, scoped, tag = 'input window, operand 4, single buffered']
    #allocation5 [shape = 's32[1]{0}', space=sflag, size = 0x4, scoped, tag = 'scoped memory for _forward_impl.1']
    %12 = vsyncpa [#allocation3], 0
    %13 = vsyncpa [#allocation5], 0
    // Predicated region
    $region2: #{_forward_impl.1} parent=1 // pred_check
      _
    $region3: #{_forward_impl.1} parent=1 // pred_check_branch
      %15 = sbr.rel (0) target = $region5
    $region4: #{_forward_impl.1} parent=1 // pred_region
      _
    $region5: #{_forward_impl.1} parent=1 // pred_fallthru
      _
    // Predicated region
    $region6: #{_forward_impl.1} parent=1 // pred_check
      _
    $region7: #{_forward_impl.1} parent=1 // pred_check_branch
      %17 = sbr.rel (0) target = $region9
    $region8: #{_forward_impl.1} parent=1 // pred_region
      %s19 = ssub.s32 6144, 6144
      %20 = vsyncadd [#allocation3], %s19
      %s21 = sshll.u32 [#allocation2], 4
      %s22 = int_to_ptr.vmem [resolvable:$true] %s21
      %27 = dma.hbm_to_vmem [thread:$0]  %s1, 6144, %s22, [#allocation3], 64, 64, 4
    $region9: #{_forward_impl.1} parent=1 // pred_fallthru
      _
    // Predicated region
    $region10: #{_forward_impl.1} parent=1 // pred_check
      _
    $region11: #{_forward_impl.1} parent=1 // pred_check_branch
      %29 = sbr.rel (0) target = $region13
    $region12: #{_forward_impl.1} parent=1 // pred_region
      _
    $region13: #{_forward_impl.1} parent=1 // pred_fallthru
      _
    // Predicated region
    $region14: #{_forward_impl.1} parent=1 // pred_check
      _
    $region15: #{_forward_impl.1} parent=1 // pred_check_branch
      %31 = sbr.rel (0) target = $region17
    $region16: #{_forward_impl.1} parent=1 // pred_region
      _
    $region17: #{_forward_impl.1} parent=1 // pred_fallthru
      _
    // Predicated region
    $region18: #{_forward_impl.1} parent=1 // pred_check
      _
    $region19: #{_forward_impl.1} parent=1 // pred_check_branch
      %33 = sbr.rel (0) target = $region21
    $region20: #{_forward_impl.1} parent=1 // pred_region
      %s35 = ssub.s32 6144, 6144
      %36 = vsyncadd [#allocation5], %s35
      %s37 = sshll.u32 [#allocation4], 4
      %s38 = int_to_ptr.vmem [resolvable:$true] %s37
      %43 = dma.hbm_to_vmem [thread:$0]  %s4, 6144, %s38, [#allocation5], 384, 384, 24
    $region21: #{_forward_impl.1} parent=1 // pred_fallthru
      _
    // Predicated region
    $region22: #{_forward_impl.1} parent=1 // pred_check
      _
    $region23: #{_forward_impl.1} parent=1 // pred_check_branch
      %45 = sbr.rel (0) target = $region25
    $region24: #{_forward_impl.1} parent=1 // pred_region
      _
    $region25: #{_forward_impl.1} parent=1 // pred_fallthru
      _
    // Predicated region
    $region26: #{_forward_impl.1} parent=1 // pred_check
      _
    $region27: #{_forward_impl.1} parent=1 // pred_check_branch
      %47 = sbr.rel (0) target = $region29
    $region28: #{_forward_impl.1} parent=1 // pred_region
      _
    $region29: #{_forward_impl.1} parent=1 // pred_fallthru
      _
    // Predicated region
    $region30: #{_forward_impl.1} parent=1 // pred_check
      _
    $region31: #{_forward_impl.1} parent=1 // pred_check_branch
      %49 = sbr.rel (0) target = $region33
    $region32: #{_forward_impl.1} parent=1 // pred_region
      %50 = dma.done [#allocation3], 6144
    $region33: #{_forward_impl.1} parent=1 // pred_fallthru
      _
    // Predicated region
    $region34: #{_forward_impl.1} parent=1 // pred_check
      _
    $region35: #{_forward_impl.1} parent=1 // pred_check_branch
      %52 = sbr.rel (0) target = $region37
    $region36: #{_forward_impl.1} parent=1 // pred_region
      %53 = dma.done [#allocation5], 6144
    $region37: #{_forward_impl.1} parent=1 // pred_fallthru
      _
    %v55 = vld [vmem:[%s0] sm:$0xff]
    %v56 = vld [vmem:[%s0 + $0x8] sm:$0xff]
    %v57 = vld [vmem:[%s0 + $0x10] sm:$0xff]
    %v58 = vld [vmem:[#allocation2] sm:$0xf]
    %v59 = vld [vmem:[#allocation2 + $0x4] sm:$0xf]
    %v60 = vld [vmem:[#allocation2 + $0x8] sm:$0xf]
    %v61 = vld [vmem:[#allocation2 + $0xc] sm:$0xf]
    %v62 = vld [vmem:[#allocation2 + $0x10] sm:$0xf]
    %v63 = vld [vmem:[#allocation2 + $0x14] sm:$0xf]
    %v64 = vld [vmem:[#allocation2 + $0x18] sm:$0xf]
    %v65 = vld [vmem:[#allocation2 + $0x1c] sm:$0xf]
    %v66 = vld [vmem:[#allocation2 + $0x20] sm:$0xf]
    %v67 = vld [vmem:[#allocation2 + $0x24] sm:$0xf]
    %v68 = vld [vmem:[#allocation2 + $0x28] sm:$0xf]
    %v69 = vld [vmem:[#allocation2 + $0x2c] sm:$0xf]
    %v70 = vld [vmem:[#allocation2 + $0x30] sm:$0xf]
    %v71 = vld [vmem:[#allocation2 + $0x34] sm:$0xf]
    %v72 = vld [vmem:[#allocation2 + $0x38] sm:$0xf]
    %v73 = vld [vmem:[#allocation2 + $0x3c] sm:$0xf]
    %v74 = vld [vmem:[#allocation2 + $0x40] sm:$0xf]
    %v75 = vld [vmem:[#allocation2 + $0x44] sm:$0xf]
    %v76 = vld [vmem:[#allocation2 + $0x48] sm:$0xf]
    %v77 = vld [vmem:[#allocation2 + $0x4c] sm:$0xf]
    %v78 = vld [vmem:[#allocation2 + $0x50] sm:$0xf]
    %v79 = vld [vmem:[#allocation2 + $0x54] sm:$0xf]
    %v80 = vld [vmem:[#allocation2 + $0x58] sm:$0xf]
    %v81 = vld [vmem:[#allocation2 + $0x5c] sm:$0xf]
    %v82 = vld [vmem:[#allocation2 + $0x60] sm:$0xf]
    %v83 = vld [vmem:[#allocation2 + $0x64] sm:$0xf]
    %v84 = vld [vmem:[#allocation2 + $0x68] sm:$0xf]
    %v85 = vld [vmem:[#allocation2 + $0x6c] sm:$0xf]
    %v86 = vld [vmem:[#allocation2 + $0x70] sm:$0xf]
    %v87 = vld [vmem:[#allocation2 + $0x74] sm:$0xf]
    %v88 = vld [vmem:[#allocation2 + $0x78] sm:$0xf]
    %v89 = vld [vmem:[#allocation2 + $0x7c] sm:$0xf]
    %v90 = vld [vmem:[#allocation2 + $0x80] sm:$0xf]
    %v91 = vld [vmem:[#allocation2 + $0x84] sm:$0xf]
    %v92 = vld [vmem:[#allocation2 + $0x88] sm:$0xf]
    %v93 = vld [vmem:[#allocation2 + $0x8c] sm:$0xf]
    %v94 = vld [vmem:[#allocation2 + $0x90] sm:$0xf]
    %v95 = vld [vmem:[#allocation2 + $0x94] sm:$0xf]
    %v96 = vld [vmem:[#allocation2 + $0x98] sm:$0xf]
    %v97 = vld [vmem:[#allocation2 + $0x9c] sm:$0xf]
    %v98 = vld [vmem:[#allocation2 + $0xa0] sm:$0xf]
    %v99 = vld [vmem:[#allocation2 + $0xa4] sm:$0xf]
    %v100 = vld [vmem:[#allocation2 + $0xa8] sm:$0xf]
    %v101 = vld [vmem:[#allocation2 + $0xac] sm:$0xf]
    %v102 = vld [vmem:[#allocation2 + $0xb0] sm:$0xf]
    %v103 = vld [vmem:[#allocation2 + $0xb4] sm:$0xf]
    %v104 = vld [vmem:[#allocation2 + $0xb8] sm:$0xf]
    %v105 = vld [vmem:[#allocation2 + $0xbc] sm:$0xf]
    %v106 = vld [vmem:[#allocation2 + $0xc0] sm:$0xf]
    %v107 = vld [vmem:[#allocation2 + $0xc4] sm:$0xf]
    %v108 = vld [vmem:[#allocation2 + $0xc8] sm:$0xf]
    %v109 = vld [vmem:[#allocation2 + $0xcc] sm:$0xf]
    %v110 = vld [vmem:[#allocation2 + $0xd0] sm:$0xf]
    %v111 = vld [vmem:[#allocation2 + $0xd4] sm:$0xf]
    %v112 = vld [vmem:[#allocation2 + $0xd8] sm:$0xf]
    %v113 = vld [vmem:[#allocation2 + $0xdc] sm:$0xf]
    %v114 = vld [vmem:[#allocation2 + $0xe0] sm:$0xf]
    %v115 = vld [vmem:[#allocation2 + $0xe4] sm:$0xf]
    %v116 = vld [vmem:[#allocation2 + $0xe8] sm:$0xf]
    %v117 = vld [vmem:[#allocation2 + $0xec] sm:$0xf]
    %v118 = vld [vmem:[#allocation2 + $0xf0] sm:$0xf]
    %v119 = vld [vmem:[#allocation2 + $0xf4] sm:$0xf]
    %v120 = vld [vmem:[#allocation2 + $0xf8] sm:$0xf]
    %v121 = vld [vmem:[#allocation2 + $0xfc] sm:$0xf]
    %v122 = vld [vmem:[#allocation2 + $0x100] sm:$0xf]
    %v123 = vld [vmem:[#allocation2 + $0x104] sm:$0xf]
    %v124 = vld [vmem:[#allocation2 + $0x108] sm:$0xf]
    %v125 = vld [vmem:[#allocation2 + $0x10c] sm:$0xf]
    %v126 = vld [vmem:[#allocation2 + $0x110] sm:$0xf]
    %v127 = vld [vmem:[#allocation2 + $0x114] sm:$0xf]
    %v128 = vld [vmem:[#allocation2 + $0x118] sm:$0xf]
    %v129 = vld [vmem:[#allocation2 + $0x11c] sm:$0xf]
    %v130 = vld [vmem:[#allocation2 + $0x120] sm:$0xf]
    %v131 = vld [vmem:[#allocation2 + $0x124] sm:$0xf]
    %v132 = vld [vmem:[#allocation2 + $0x128] sm:$0xf]
    %v133 = vld [vmem:[#allocation2 + $0x12c] sm:$0xf]
    %v134 = vld [vmem:[#allocation2 + $0x130] sm:$0xf]
    %v135 = vld [vmem:[#allocation2 + $0x134] sm:$0xf]
    %v136 = vld [vmem:[#allocation2 + $0x138] sm:$0xf]
    %v137 = vld [vmem:[#allocation2 + $0x13c] sm:$0xf]
    %v138 = vld [vmem:[#allocation2 + $0x140] sm:$0xf]
    %v139 = vld [vmem:[#allocation2 + $0x144] sm:$0xf]
    %v140 = vld [vmem:[#allocation2 + $0x148] sm:$0xf]
    %v141 = vld [vmem:[#allocation2 + $0x14c] sm:$0xf]
    %v142 = vld [vmem:[#allocation2 + $0x150] sm:$0xf]
    %v143 = vld [vmem:[#allocation2 + $0x154] sm:$0xf]
    %v144 = vld [vmem:[#allocation2 + $0x158] sm:$0xf]
    %v145 = vld [vmem:[#allocation2 + $0x15c] sm:$0xf]
    %v146 = vld [vmem:[#allocation2 + $0x160] sm:$0xf]
    %v147 = vld [vmem:[#allocation2 + $0x164] sm:$0xf]
    %v148 = vld [vmem:[#allocation2 + $0x168] sm:$0xf]
    %v149 = vld [vmem:[#allocation2 + $0x16c] sm:$0xf]
    %v150 = vld [vmem:[#allocation2 + $0x170] sm:$0xf]
    %v151 = vld [vmem:[#allocation2 + $0x174] sm:$0xf]
    %v152 = vld [vmem:[#allocation2 + $0x178] sm:$0xf]
    %v153 = vld [vmem:[#allocation2 + $0x17c] sm:$0xf]
    %v154 = vld [vmem:[%s5] sm:$0x1]
    %v155 = vlaneseq
    %v156 = vshrl.u32 %v155, 7
    %v157 = vsub.s32 0, %v156
    %v158 = vrot.slane %v154, %v157
    %v162 = vunpack.c.l.b16 %v55
    %v163 = vunpack.c.h.b16 %v55
    %v164 = vunpack.c.l.b16 %v56
    %v165 = vunpack.c.h.b16 %v56
    %v166 = vunpack.c.l.b16 %v57
    %v167 = vunpack.c.h.b16 %v57
    %v168 = vpack.c.b16 %v162, %v162
    %v169 = vpack.c.b16 %v163, %v163
    %v170 = vpack.c.b16 %v164, %v164
    %v171 = vpack.c.b16 %v165, %v165
    %v172 = vpack.c.b16 %v166, %v166
    %v173 = vpack.c.b16 %v167, %v167
    %v276 = vunpack.c.l.b16 %v58
    %v277 = vunpack.c.l.b16 %v59
    %v278 = vunpack.c.l.b16 %v60
    %v279 = vunpack.c.l.b16 %v61
    %v280 = vunpack.c.l.b16 %v62
    %v281 = vunpack.c.l.b16 %v63
    %v282 = vunpack.c.l.b16 %v64
    %v283 = vunpack.c.l.b16 %v65
    %v284 = vunpack.c.l.b16 %v66
    %v285 = vunpack.c.l.b16 %v67
    %v286 = vunpack.c.l.b16 %v68
    %v287 = vunpack.c.l.b16 %v69
    %v288 = vunpack.c.l.b16 %v70
    %v289 = vunpack.c.l.b16 %v71
    %v290 = vunpack.c.l.b16 %v72
    %v291 = vunpack.c.l.b16 %v73
    %v292 = vunpack.c.l.b16 %v74
    %v293 = vunpack.c.l.b16 %v75
    %v294 = vunpack.c.l.b16 %v76
    %v295 = vunpack.c.l.b16 %v77
    %v296 = vunpack.c.l.b16 %v78
    %v297 = vunpack.c.l.b16 %v79
    %v298 = vunpack.c.l.b16 %v80
    %v299 = vunpack.c.l.b16 %v81
    %v300 = vunpack.c.l.b16 %v82
    %v301 = vunpack.c.l.b16 %v83
    %v302 = vunpack.c.l.b16 %v84
    %v303 = vunpack.c.l.b16 %v85
    %v304 = vunpack.c.l.b16 %v86
    %v305 = vunpack.c.l.b16 %v87
    %v306 = vunpack.c.l.b16 %v88
    %v307 = vunpack.c.l.b16 %v89
    %v308 = vunpack.c.l.b16 %v90
    %v309 = vunpack.c.l.b16 %v91
    %v310 = vunpack.c.l.b16 %v92
    %v311 = vunpack.c.l.b16 %v93
    %v312 = vunpack.c.l.b16 %v94
    %v313 = vunpack.c.l.b16 %v95
    %v314 = vunpack.c.l.b16 %v96
    %v315 = vunpack.c.l.b16 %v97
    %v316 = vunpack.c.l.b16 %v98
    %v317 = vunpack.c.l.b16 %v99
    %v318 = vunpack.c.l.b16 %v100
    %v319 = vunpack.c.l.b16 %v101
    %v320 = vunpack.c.l.b16 %v102
    %v321 = vunpack.c.l.b16 %v103
    %v322 = vunpack.c.l.b16 %v104
    %v323 = vunpack.c.l.b16 %v105
    %v324 = vunpack.c.l.b16 %v106
    %v325 = vunpack.c.l.b16 %v107
    %v326 = vunpack.c.l.b16 %v108
    %v327 = vunpack.c.l.b16 %v109
    %v328 = vunpack.c.l.b16 %v110
    %v329 = vunpack.c.l.b16 %v111
    %v330 = vunpack.c.l.b16 %v112
    %v331 = vunpack.c.l.b16 %v113
    %v332 = vunpack.c.l.b16 %v114
    %v333 = vunpack.c.l.b16 %v115
    %v334 = vunpack.c.l.b16 %v116
    %v335 = vunpack.c.l.b16 %v117
    %v336 = vunpack.c.l.b16 %v118
    %v337 = vunpack.c.l.b16 %v119
    %v338 = vunpack.c.l.b16 %v120
    %v339 = vunpack.c.l.b16 %v121
    %v340 = vunpack.c.l.b16 %v122
    %v341 = vunpack.c.l.b16 %v123
    %v342 = vunpack.c.l.b16 %v124
    %v343 = vunpack.c.l.b16 %v125
    %v344 = vunpack.c.l.b16 %v126
    %v345 = vunpack.c.l.b16 %v127
    %v346 = vunpack.c.l.b16 %v128
    %v347 = vunpack.c.l.b16 %v129
    %v348 = vunpack.c.l.b16 %v130
    %v349 = vunpack.c.l.b16 %v131
    %v350 = vunpack.c.l.b16 %v132
    %v351 = vunpack.c.l.b16 %v133
    %v352 = vunpack.c.l.b16 %v134
    %v353 = vunpack.c.l.b16 %v135
    %v354 = vunpack.c.l.b16 %v136
    %v355 = vunpack.c.l.b16 %v137
    %v356 = vunpack.c.l.b16 %v138
    %v357 = vunpack.c.l.b16 %v139
    %v358 = vunpack.c.l.b16 %v140
    %v359 = vunpack.c.l.b16 %v141
    %v360 = vunpack.c.l.b16 %v142
    %v361 = vunpack.c.l.b16 %v143
    %v362 = vunpack.c.l.b16 %v144
    %v363 = vunpack.c.l.b16 %v145
    %v364 = vunpack.c.l.b16 %v146
    %v365 = vunpack.c.l.b16 %v147
    %v366 = vunpack.c.l.b16 %v148
    %v367 = vunpack.c.l.b16 %v149
    %v368 = vunpack.c.l.b16 %v150
    %v369 = vunpack.c.l.b16 %v151
    %v370 = vunpack.c.l.b16 %v152
    %v371 = vunpack.c.l.b16 %v153
    %v372 = vpack.c.b16 %v277, %v276
    %v373 = vpack.c.b16 %v279, %v278
    %v374 = vpack.c.b16 %v281, %v280
    %v375 = vpack.c.b16 %v283, %v282
    %v376 = vpack.c.b16 %v285, %v284
    %v377 = vpack.c.b16 %v287, %v286
    %v378 = vpack.c.b16 %v289, %v288
    %v379 = vpack.c.b16 %v291, %v290
    %v380 = vpack.c.b16 %v293, %v292
    %v381 = vpack.c.b16 %v295, %v294
    %v382 = vpack.c.b16 %v297, %v296
    %v383 = vpack.c.b16 %v299, %v298
    %v384 = vpack.c.b16 %v301, %v300
    %v385 = vpack.c.b16 %v303, %v302
    %v386 = vpack.c.b16 %v305, %v304
    %v387 = vpack.c.b16 %v307, %v306
    %v388 = vpack.c.b16 %v309, %v308
    %v389 = vpack.c.b16 %v311, %v310
    %v390 = vpack.c.b16 %v313, %v312
    %v391 = vpack.c.b16 %v315, %v314
    %v392 = vpack.c.b16 %v317, %v316
    %v393 = vpack.c.b16 %v319, %v318
    %v394 = vpack.c.b16 %v321, %v320
    %v395 = vpack.c.b16 %v323, %v322
    %v396 = vpack.c.b16 %v325, %v324
    %v397 = vpack.c.b16 %v327, %v326
    %v398 = vpack.c.b16 %v329, %v328
    %v399 = vpack.c.b16 %v331, %v330
    %v400 = vpack.c.b16 %v333, %v332
    %v401 = vpack.c.b16 %v335, %v334
    %v402 = vpack.c.b16 %v337, %v336
    %v403 = vpack.c.b16 %v339, %v338
    %v404 = vpack.c.b16 %v341, %v340
    %v405 = vpack.c.b16 %v343, %v342
    %v406 = vpack.c.b16 %v345, %v344
    %v407 = vpack.c.b16 %v347, %v346
    %v408 = vpack.c.b16 %v349, %v348
    %v409 = vpack.c.b16 %v351, %v350
    %v410 = vpack.c.b16 %v353, %v352
    %v411 = vpack.c.b16 %v355, %v354
    %v412 = vpack.c.b16 %v357, %v356
    %v413 = vpack.c.b16 %v359, %v358
    %v414 = vpack.c.b16 %v361, %v360
    %v415 = vpack.c.b16 %v363, %v362
    %v416 = vpack.c.b16 %v365, %v364
    %v417 = vpack.c.b16 %v367, %v366
    %v418 = vpack.c.b16 %v369, %v368
    %v419 = vpack.c.b16 %v371, %v370
    %468 = vmatprep.subr.bf16.mxu0 0
    %469 = vmatpush1.bf16.msra.mxu0 %v372
    %470 = vmatprep.subr.bf16.mxu0 0
    %471 = vmatpush1.bf16.msra.mxu0 %v373
    %472 = vmatprep.subr.bf16.mxu0 0
    %473 = vmatpush1.bf16.msra.mxu0 %v374
    %474 = vmatprep.subr.bf16.mxu0 0
    %475 = vmatpush1.bf16.msra.mxu0 %v375
    %476 = vmatprep.subr.bf16.mxu0 0
    %477 = vmatpush1.bf16.msra.mxu0 %v376
    %478 = vmatprep.subr.bf16.mxu0 0
    %479 = vmatpush1.bf16.msra.mxu0 %v377
    %480 = vmatprep.subr.bf16.mxu0 0
    %481 = vmatpush1.bf16.msra.mxu0 %v378
    %482 = vmatprep.subr.bf16.mxu0 0
    %483 = vmatpush1.bf16.msra.mxu0 %v379
    %484 = vmatprep.subr.bf16.mxu0 0
    %485 = vmatpush1.bf16.msra.mxu0 %v380
    %486 = vmatprep.subr.bf16.mxu0 0
    %487 = vmatpush1.bf16.msra.mxu0 %v381
    %488 = vmatprep.subr.bf16.mxu0 0
    %489 = vmatpush1.bf16.msra.mxu0 %v382
    %490 = vmatprep.subr.bf16.mxu0 0
    %491 = vmatpush1.bf16.msra.mxu0 %v383
    %492 = vmatprep.subr.bf16.mxu0 0
    %493 = vmatpush1.bf16.msra.mxu0 %v384
    %494 = vmatprep.subr.bf16.mxu0 0
    %495 = vmatpush1.bf16.msra.mxu0 %v385
    %496 = vmatprep.subr.bf16.mxu0 0
    %497 = vmatpush1.bf16.msra.mxu0 %v386
    %498 = vmatprep.subr.bf16.mxu0 0
    %499 = vmatpush1.bf16.msra.mxu0 %v387
    %500 = vmatprep.mubr.bf16.mxu0 %v169
    %501 = vmatmul.mubr.bf16.gmra.mrb[0].mxu0 %v168
    %v502 = vpop.f32.mrb[0].mxu0
    %v503 = vadd.f32 %v158, %v502
    %v504 = vpop.f32.mrb[0].mxu0
    %v505 = vpop.f32.mrb[0].mxu0
    %v506 = vpop.f32.mrb[0].mxu0
    %507 = vdwg.mxu0
    %508 = vmatprep.subr.bf16.mxu0 0
    %509 = vmatpush1.bf16.msra.mxu0 %v388
    %510 = vmatprep.subr.bf16.mxu0 0
    %511 = vmatpush1.bf16.msra.mxu0 %v389
    %512 = vmatprep.subr.bf16.mxu0 0
    %513 = vmatpush1.bf16.msra.mxu0 %v390
    %514 = vmatprep.subr.bf16.mxu0 0
    %515 = vmatpush1.bf16.msra.mxu0 %v391
    %516 = vmatprep.subr.bf16.mxu0 0
    %517 = vmatpush1.bf16.msra.mxu0 %v392
    %518 = vmatprep.subr.bf16.mxu0 0
    %519 = vmatpush1.bf16.msra.mxu0 %v393
    %520 = vmatprep.subr.bf16.mxu0 0
    %521 = vmatpush1.bf16.msra.mxu0 %v394
    %522 = vmatprep.subr.bf16.mxu0 0
    %523 = vmatpush1.bf16.msra.mxu0 %v395
    %524 = vmatprep.subr.bf16.mxu0 0
    %525 = vmatpush1.bf16.msra.mxu0 %v396
    %526 = vmatprep.subr.bf16.mxu0 0
    %527 = vmatpush1.bf16.msra.mxu0 %v397
    %528 = vmatprep.subr.bf16.mxu0 0
    %529 = vmatpush1.bf16.msra.mxu0 %v398
    %530 = vmatprep.subr.bf16.mxu0 0
    %531 = vmatpush1.bf16.msra.mxu0 %v399
    %532 = vmatprep.subr.bf16.mxu0 0
    %533 = vmatpush1.bf16.msra.mxu0 %v400
    %534 = vmatprep.subr.bf16.mxu0 0
    %535 = vmatpush1.bf16.msra.mxu0 %v401
    %536 = vmatprep.subr.bf16.mxu0 0
    %537 = vmatpush1.bf16.msra.mxu0 %v402
    %538 = vmatprep.subr.bf16.mxu0 0
    %539 = vmatpush1.bf16.msra.mxu0 %v403
    %540 = vmatprep.mubr.bf16.mxu0 %v171
    %541 = vmatmul.mubr.bf16.gmra.mrb[0].mxu0 %v170
    %v542 = vpop.f32.mrb[0].mxu0
    %v543 = vadd.f32 %v503, %v542
    %v544 = vpop.f32.mrb[0].mxu0
    %v545 = vpop.f32.mrb[0].mxu0
    %v546 = vpop.f32.mrb[0].mxu0
    %547 = vdwg.mxu0
    %548 = vmatprep.subr.bf16.mxu0 0
    %549 = vmatpush1.bf16.msra.mxu0 %v404
    %550 = vmatprep.subr.bf16.mxu0 0
    %551 = vmatpush1.bf16.msra.mxu0 %v405
    %552 = vmatprep.subr.bf16.mxu0 0
    %553 = vmatpush1.bf16.msra.mxu0 %v406
    %554 = vmatprep.subr.bf16.mxu0 0
    %555 = vmatpush1.bf16.msra.mxu0 %v407
    %556 = vmatprep.subr.bf16.mxu0 0
    %557 = vmatpush1.bf16.msra.mxu0 %v408
    %558 = vmatprep.subr.bf16.mxu0 0
    %559 = vmatpush1.bf16.msra.mxu0 %v409
    %560 = vmatprep.subr.bf16.mxu0 0
    %561 = vmatpush1.bf16.msra.mxu0 %v410
    %562 = vmatprep.subr.bf16.mxu0 0
    %563 = vmatpush1.bf16.msra.mxu0 %v411
    %564 = vmatprep.subr.bf16.mxu0 0
    %565 = vmatpush1.bf16.msra.mxu0 %v412
    %566 = vmatprep.subr.bf16.mxu0 0
    %567 = vmatpush1.bf16.msra.mxu0 %v413
    %568 = vmatprep.subr.bf16.mxu0 0
    %569 = vmatpush1.bf16.msra.mxu0 %v414
    %570 = vmatprep.subr.bf16.mxu0 0
    %571 = vmatpush1.bf16.msra.mxu0 %v415
    %572 = vmatprep.subr.bf16.mxu0 0
    %573 = vmatpush1.bf16.msra.mxu0 %v416
    %574 = vmatprep.subr.bf16.mxu0 0
    %575 = vmatpush1.bf16.msra.mxu0 %v417
    %576 = vmatprep.subr.bf16.mxu0 0
    %577 = vmatpush1.bf16.msra.mxu0 %v418
    %578 = vmatprep.subr.bf16.mxu0 0
    %579 = vmatpush1.bf16.msra.mxu0 %v419
    %580 = vmatprep.mubr.bf16.mxu0 %v173
    %581 = vmatmul.mubr.bf16.gmra.mrb[0].mxu0 %v172
    %v582 = vpop.f32.mrb[0].mxu0
    %v583 = vadd.f32 %v543, %v582
    %v584 = vpop.f32.mrb[0].mxu0
    %v585 = vpop.f32.mrb[0].mxu0
    %v586 = vpop.f32.mrb[0].mxu0
    %587 = vdwg.mxu0
    %v588 = vmax.f32 %v583, 0.0
    %v589 = vpack.c.bf16 %v588, %v588
    %v590 = vld [vmem:[%s2] sm:$0xf]
    %v591 = vld [vmem:[%s2 + $0x4] sm:$0xf]
    %v592 = vld [vmem:[%s2 + $0x8] sm:$0xf]
    %v593 = vld [vmem:[%s2 + $0xc] sm:$0xf]
    %v594 = vld [vmem:[%s2 + $0x10] sm:$0xf]
    %v595 = vld [vmem:[%s2 + $0x14] sm:$0xf]
    %v596 = vld [vmem:[%s2 + $0x18] sm:$0xf]
    %v597 = vld [vmem:[%s2 + $0x1c] sm:$0xf]
    %v598 = vld [vmem:[%s2 + $0x20] sm:$0xf]
    %v599 = vld [vmem:[%s2 + $0x24] sm:$0xf]
    %v600 = vld [vmem:[%s2 + $0x28] sm:$0xf]
    %v601 = vld [vmem:[%s2 + $0x2c] sm:$0xf]
    %v602 = vld [vmem:[%s2 + $0x30] sm:$0xf]
    %v603 = vld [vmem:[%s2 + $0x34] sm:$0xf]
    %v604 = vld [vmem:[%s2 + $0x38] sm:$0xf]
    %v605 = vld [vmem:[%s2 + $0x3c] sm:$0xf]
    %v606 = vld [vmem:[%s5 + $0x1] sm:$0x1]
    %v607 = vlaneseq
    %v608 = vshrl.u32 %v607, 7
    %v609 = vsub.s32 0, %v608
    %v610 = vrot.slane %v606, %v609
    %v627 = vunpack.c.l.b16 %v590
    %v628 = vunpack.c.l.b16 %v591
    %v629 = vunpack.c.l.b16 %v592
    %v630 = vunpack.c.l.b16 %v593
    %v631 = vunpack.c.l.b16 %v594
    %v632 = vunpack.c.l.b16 %v595
    %v633 = vunpack.c.l.b16 %v596
    %v634 = vunpack.c.l.b16 %v597
    %v635 = vunpack.c.l.b16 %v598
    %v636 = vunpack.c.l.b16 %v599
    %v637 = vunpack.c.l.b16 %v600
    %v638 = vunpack.c.l.b16 %v601
    %v639 = vunpack.c.l.b16 %v602
    %v640 = vunpack.c.l.b16 %v603
    %v641 = vunpack.c.l.b16 %v604
    %v642 = vunpack.c.l.b16 %v605
    %v643 = vpack.c.b16 %v628, %v627
    %v644 = vpack.c.b16 %v630, %v629
    %v645 = vpack.c.b16 %v632, %v631
    %v646 = vpack.c.b16 %v634, %v633
    %v647 = vpack.c.b16 %v636, %v635
    %v648 = vpack.c.b16 %v638, %v637
    %v649 = vpack.c.b16 %v640, %v639
    %v650 = vpack.c.b16 %v642, %v641
    %659 = vmatprep.subr.bf16.mxu0 0
    %660 = vmatpush1.bf16.msra.mxu0 %v643
    %661 = vmatprep.subr.bf16.mxu0 0
    %662 = vmatpush1.bf16.msra.mxu0 %v644
    %663 = vmatprep.subr.bf16.mxu0 0
    %664 = vmatpush1.bf16.msra.mxu0 %v645
    %665 = vmatprep.subr.bf16.mxu0 0
    %666 = vmatpush1.bf16.msra.mxu0 %v646
    %667 = vmatprep.subr.bf16.mxu0 0
    %668 = vmatpush1.bf16.msra.mxu0 %v647
    %669 = vmatprep.subr.bf16.mxu0 0
    %670 = vmatpush1.bf16.msra.mxu0 %v648
    %671 = vmatprep.subr.bf16.mxu0 0
    %672 = vmatpush1.bf16.msra.mxu0 %v649
    %673 = vmatprep.subr.bf16.mxu0 0
    %674 = vmatpush1.bf16.msra.mxu0 %v650
    %675 = vmatprep.subr.bf16.mxu0 0
    %676 = vmatpush1.bf16.msra.mxu0 0
    %677 = vmatprep.subr.bf16.mxu0 0
    %678 = vmatpush1.bf16.msra.mxu0 0
    %679 = vmatprep.subr.bf16.mxu0 0
    %680 = vmatpush1.bf16.msra.mxu0 0
    %681 = vmatprep.subr.bf16.mxu0 0
    %682 = vmatpush1.bf16.msra.mxu0 0
    %683 = vmatprep.subr.bf16.mxu0 0
    %684 = vmatpush1.bf16.msra.mxu0 0
    %685 = vmatprep.subr.bf16.mxu0 0
    %686 = vmatpush1.bf16.msra.mxu0 0
    %687 = vmatprep.subr.bf16.mxu0 0
    %688 = vmatpush1.bf16.msra.mxu0 0
    %689 = vmatprep.subr.bf16.mxu0 0
    %690 = vmatpush1.bf16.msra.mxu0 0
    %691 = vmatprep.mubr.bf16.mxu0 0
    %692 = vmatmul.mubr.bf16.gmra.mrb[0].mxu0 %v589
    %v693 = vpop.f32.mrb[0].mxu0
    %v694 = vadd.f32 %v610, %v693
    %v695 = vpop.f32.mrb[0].mxu0
    %v696 = vpop.f32.mrb[0].mxu0
    %v697 = vpop.f32.mrb[0].mxu0
    %698 = vdwg.mxu0
    %v699 = vmax.f32 %v694, 0.0
    %v700 = vpack.c.bf16 %v699, %v699
    %v701 = vld [vmem:[%s3] sm:$0xf]
    %v702 = vld [vmem:[%s3 + $0x4] sm:$0xf]
    %v703 = vld [vmem:[%s3 + $0x8] sm:$0xf]
    %v704 = vld [vmem:[%s3 + $0xc] sm:$0xf]
    %v705 = vld [vmem:[%s3 + $0x10] sm:$0xf]
    %v706 = vld [vmem:[%s3 + $0x14] sm:$0xf]
    %v707 = vld [vmem:[%s3 + $0x18] sm:$0xf]
    %v708 = vld [vmem:[%s3 + $0x1c] sm:$0xf]
    %v709 = vld [vmem:[%s3 + $0x20] sm:$0xf]
    %v710 = vld [vmem:[%s3 + $0x24] sm:$0xf]
    %v711 = vld [vmem:[%s3 + $0x28] sm:$0xf]
    %v712 = vld [vmem:[%s3 + $0x2c] sm:$0xf]
    %v713 = vld [vmem:[%s3 + $0x30] sm:$0xf]
    %v714 = vld [vmem:[%s3 + $0x34] sm:$0xf]
    %v715 = vld [vmem:[%s3 + $0x38] sm:$0xf]
    %v716 = vld [vmem:[%s3 + $0x3c] sm:$0xf]
    %v717 = vld [vmem:[%s5 + $0x2] sm:$0x1]
    %v718 = vlaneseq
    %v719 = vshrl.u32 %v718, 7
    %v720 = vsub.s32 0, %v719
    %v721 = vrot.slane %v717, %v720
    %v738 = vunpack.c.l.b16 %v701
    %v739 = vunpack.c.l.b16 %v702
    %v740 = vunpack.c.l.b16 %v703
    %v741 = vunpack.c.l.b16 %v704
    %v742 = vunpack.c.l.b16 %v705
    %v743 = vunpack.c.l.b16 %v706
    %v744 = vunpack.c.l.b16 %v707
    %v745 = vunpack.c.l.b16 %v708
    %v746 = vunpack.c.l.b16 %v709
    %v747 = vunpack.c.l.b16 %v710
    %v748 = vunpack.c.l.b16 %v711
    %v749 = vunpack.c.l.b16 %v712
    %v750 = vunpack.c.l.b16 %v713
    %v751 = vunpack.c.l.b16 %v714
    %v752 = vunpack.c.l.b16 %v715
    %v753 = vunpack.c.l.b16 %v716
    %v754 = vpack.c.b16 %v739, %v738
    %v755 = vpack.c.b16 %v741, %v740
    %v756 = vpack.c.b16 %v743, %v742
    %v757 = vpack.c.b16 %v745, %v744
    %v758 = vpack.c.b16 %v747, %v746
    %v759 = vpack.c.b16 %v749, %v748
    %v760 = vpack.c.b16 %v751, %v750
    %v761 = vpack.c.b16 %v753, %v752
    %770 = vmatprep.subr.bf16.mxu0 0
    %771 = vmatpush1.bf16.msra.mxu0 %v754
    %772 = vmatprep.subr.bf16.mxu0 0
    %773 = vmatpush1.bf16.msra.mxu0 %v755
    %774 = vmatprep.subr.bf16.mxu0 0
    %775 = vmatpush1.bf16.msra.mxu0 %v756
    %776 = vmatprep.subr.bf16.mxu0 0
    %777 = vmatpush1.bf16.msra.mxu0 %v757
    %778 = vmatprep.subr.bf16.mxu0 0
    %779 = vmatpush1.bf16.msra.mxu0 %v758
    %780 = vmatprep.subr.bf16.mxu0 0
    %781 = vmatpush1.bf16.msra.mxu0 %v759
    %782 = vmatprep.subr.bf16.mxu0 0
    %783 = vmatpush1.bf16.msra.mxu0 %v760
    %784 = vmatprep.subr.bf16.mxu0 0
    %785 = vmatpush1.bf16.msra.mxu0 %v761
    %786 = vmatprep.subr.bf16.mxu0 0
    %787 = vmatpush1.bf16.msra.mxu0 0
    %788 = vmatprep.subr.bf16.mxu0 0
    %789 = vmatpush1.bf16.msra.mxu0 0
    %790 = vmatprep.subr.bf16.mxu0 0
    %791 = vmatpush1.bf16.msra.mxu0 0
    %792 = vmatprep.subr.bf16.mxu0 0
    %793 = vmatpush1.bf16.msra.mxu0 0
    %794 = vmatprep.subr.bf16.mxu0 0
    %795 = vmatpush1.bf16.msra.mxu0 0
    %796 = vmatprep.subr.bf16.mxu0 0
    %797 = vmatpush1.bf16.msra.mxu0 0
    %798 = vmatprep.subr.bf16.mxu0 0
    %799 = vmatpush1.bf16.msra.mxu0 0
    %800 = vmatprep.subr.bf16.mxu0 0
    %801 = vmatpush1.bf16.msra.mxu0 0
    %802 = vmatprep.mubr.bf16.mxu0 0
    %803 = vmatmul.mubr.bf16.gmra.mrb[0].mxu0 %v700
    %v804 = vpop.f32.mrb[0].mxu0
    %v805 = vadd.f32 %v721, %v804
    %v806 = vpop.f32.mrb[0].mxu0
    %v807 = vpop.f32.mrb[0].mxu0
    %v808 = vpop.f32.mrb[0].mxu0
    %809 = vdwg.mxu0
    %v810 = vmax.f32 %v805, 0.0
    %v811 = vpack.c.bf16 %v810, %v810
    %v812 = vld [vmem:[#allocation4] sm:$0xff]
    %v813 = vld [vmem:[#allocation4 + $0x8] sm:$0xff]
    %v814 = vld [vmem:[#allocation4 + $0x10] sm:$0xff]
    %v815 = vld [vmem:[#allocation4 + $0x18] sm:$0xff]
    %v816 = vld [vmem:[#allocation4 + $0x20] sm:$0xff]
    %v817 = vld [vmem:[#allocation4 + $0x28] sm:$0xff]
    %v818 = vld [vmem:[#allocation4 + $0x30] sm:$0xff]
    %v819 = vld [vmem:[#allocation4 + $0x38] sm:$0xff]
    %v820 = vld [vmem:[#allocation4 + $0x40] sm:$0xff]
    %v821 = vld [vmem:[#allocation4 + $0x48] sm:$0xff]
    %v822 = vld [vmem:[#allocation4 + $0x50] sm:$0xff]
    %v823 = vld [vmem:[#allocation4 + $0x58] sm:$0xff]
    %v824 = vld [vmem:[#allocation4 + $0x60] sm:$0xff]
    %v825 = vld [vmem:[#allocation4 + $0x68] sm:$0xff]
    %v826 = vld [vmem:[#allocation4 + $0x70] sm:$0xff]
    %v827 = vld [vmem:[#allocation4 + $0x78] sm:$0xff]
    %v828 = vld [vmem:[#allocation4 + $0x80] sm:$0xff]
    %v829 = vld [vmem:[#allocation4 + $0x88] sm:$0xff]
    %v830 = vld [vmem:[#allocation4 + $0x90] sm:$0xff]
    %v831 = vld [vmem:[#allocation4 + $0x98] sm:$0xff]
    %v832 = vld [vmem:[#allocation4 + $0xa0] sm:$0xff]
    %v833 = vld [vmem:[#allocation4 + $0xa8] sm:$0xff]
    %v834 = vld [vmem:[#allocation4 + $0xb0] sm:$0xff]
    %v835 = vld [vmem:[#allocation4 + $0xb8] sm:$0xff]
    %v836 = vld [vmem:[#allocation4 + $0xc0] sm:$0xff]
    %v837 = vld [vmem:[#allocation4 + $0xc8] sm:$0xff]
    %v838 = vld [vmem:[#allocation4 + $0xd0] sm:$0xff]
    %v839 = vld [vmem:[#allocation4 + $0xd8] sm:$0xff]
    %v840 = vld [vmem:[#allocation4 + $0xe0] sm:$0xff]
    %v841 = vld [vmem:[#allocation4 + $0xe8] sm:$0xff]
    %v842 = vld [vmem:[#allocation4 + $0xf0] sm:$0xff]
    %v843 = vld [vmem:[#allocation4 + $0xf8] sm:$0xff]
    %v844 = vld [vmem:[#allocation4 + $0x100] sm:$0xff]
    %v845 = vld [vmem:[#allocation4 + $0x108] sm:$0xff]
    %v846 = vld [vmem:[#allocation4 + $0x110] sm:$0xff]
    %v847 = vld [vmem:[#allocation4 + $0x118] sm:$0xff]
    %v848 = vld [vmem:[#allocation4 + $0x120] sm:$0xff]
    %v849 = vld [vmem:[#allocation4 + $0x128] sm:$0xff]
    %v850 = vld [vmem:[#allocation4 + $0x130] sm:$0xff]
    %v851 = vld [vmem:[#allocation4 + $0x138] sm:$0xff]
    %v852 = vld [vmem:[#allocation4 + $0x140] sm:$0xff]
    %v853 = vld [vmem:[#allocation4 + $0x148] sm:$0xff]
    %v854 = vld [vmem:[#allocation4 + $0x150] sm:$0xff]
    %v855 = vld [vmem:[#allocation4 + $0x158] sm:$0xff]
    %v856 = vld [vmem:[#allocation4 + $0x160] sm:$0xff]
    %v857 = vld [vmem:[#allocation4 + $0x168] sm:$0xff]
    %v858 = vld [vmem:[#allocation4 + $0x170] sm:$0xff]
    %v859 = vld [vmem:[#allocation4 + $0x178] sm:$0xff]
    %v860 = vld [vmem:[%s6] sm:$0x3f]
    %v862 = vlaneseq
    %v863 = vshrl.u32 %v862, 7
    %v864 = vsub.s32 0, %v863
    %v865 = vrot.slane %v860, %v864
    %v866 = vlaneseq
    %v867 = vshrl.u32 %v866, 7
    %v868 = vsub.s32 1, %v867
    %v869 = vrot.slane %v860, %v868
    %v870 = vlaneseq
    %v871 = vshrl.u32 %v870, 7
    %v872 = vsub.s32 2, %v871
    %v873 = vrot.slane %v860, %v872
    %v874 = vlaneseq
    %v875 = vshrl.u32 %v874, 7
    %v876 = vsub.s32 3, %v875
    %v877 = vrot.slane %v860, %v876
    %v878 = vlaneseq
    %v879 = vshrl.u32 %v878, 7
    %v880 = vsub.s32 4, %v879
    %v881 = vrot.slane %v860, %v880
    %v882 = vlaneseq
    %v883 = vshrl.u32 %v882, 7
    %v884 = vsub.s32 5, %v883
    %v885 = vrot.slane %v860, %v884
    %v940 = vunpack.c.l.b16 %v812
    %v941 = vunpack.c.h.b16 %v812
    %v942 = vunpack.c.l.b16 %v813
    %v943 = vunpack.c.h.b16 %v813
    %v944 = vunpack.c.l.b16 %v814
    %v945 = vunpack.c.h.b16 %v814
    %v946 = vunpack.c.l.b16 %v815
    %v947 = vunpack.c.h.b16 %v815
    %v948 = vunpack.c.l.b16 %v816
    %v949 = vunpack.c.h.b16 %v816
    %v950 = vunpack.c.l.b16 %v817
    %v951 = vunpack.c.h.b16 %v817
    %v952 = vunpack.c.l.b16 %v818
    %v953 = vunpack.c.h.b16 %v818
    %v954 = vunpack.c.l.b16 %v819
    %v955 = vunpack.c.h.b16 %v819
    %v956 = vunpack.c.l.b16 %v820
    %v957 = vunpack.c.h.b16 %v820
    %v958 = vunpack.c.l.b16 %v821
    %v959 = vunpack.c.h.b16 %v821
    %v960 = vunpack.c.l.b16 %v822
    %v961 = vunpack.c.h.b16 %v822
    %v962 = vunpack.c.l.b16 %v823
    %v963 = vunpack.c.h.b16 %v823
    %v964 = vunpack.c.l.b16 %v824
    %v965 = vunpack.c.h.b16 %v824
    %v966 = vunpack.c.l.b16 %v825
    %v967 = vunpack.c.h.b16 %v825
    %v968 = vunpack.c.l.b16 %v826
    %v969 = vunpack.c.h.b16 %v826
    %v970 = vunpack.c.l.b16 %v827
    %v971 = vunpack.c.h.b16 %v827
    %v972 = vunpack.c.l.b16 %v828
    %v973 = vunpack.c.h.b16 %v828
    %v974 = vunpack.c.l.b16 %v829
    %v975 = vunpack.c.h.b16 %v829
    %v976 = vunpack.c.l.b16 %v830
    %v977 = vunpack.c.h.b16 %v830
    %v978 = vunpack.c.l.b16 %v831
    %v979 = vunpack.c.h.b16 %v831
    %v980 = vunpack.c.l.b16 %v832
    %v981 = vunpack.c.h.b16 %v832
    %v982 = vunpack.c.l.b16 %v833
    %v983 = vunpack.c.h.b16 %v833
    %v984 = vunpack.c.l.b16 %v834
    %v985 = vunpack.c.h.b16 %v834
    %v986 = vunpack.c.l.b16 %v835
    %v987 = vunpack.c.h.b16 %v835
    %v988 = vunpack.c.l.b16 %v836
    %v989 = vunpack.c.h.b16 %v836
    %v990 = vunpack.c.l.b16 %v837
    %v991 = vunpack.c.h.b16 %v837
    %v992 = vunpack.c.l.b16 %v838
    %v993 = vunpack.c.h.b16 %v838
    %v994 = vunpack.c.l.b16 %v839
    %v995 = vunpack.c.h.b16 %v839
    %v996 = vunpack.c.l.b16 %v840
    %v997 = vunpack.c.h.b16 %v840
    %v998 = vunpack.c.l.b16 %v841
    %v999 = vunpack.c.h.b16 %v841
    %v1000 = vunpack.c.l.b16 %v842
    %v1001 = vunpack.c.h.b16 %v842
    %v1002 = vunpack.c.l.b16 %v843
    %v1003 = vunpack.c.h.b16 %v843
    %v1004 = vunpack.c.l.b16 %v844
    %v1005 = vunpack.c.h.b16 %v844
    %v1006 = vunpack.c.l.b16 %v845
    %v1007 = vunpack.c.h.b16 %v845
    %v1008 = vunpack.c.l.b16 %v846
    %v1009 = vunpack.c.h.b16 %v846
    %v1010 = vunpack.c.l.b16 %v847
    %v1011 = vunpack.c.h.b16 %v847
    %v1012 = vunpack.c.l.b16 %v848
    %v1013 = vunpack.c.h.b16 %v848
    %v1014 = vunpack.c.l.b16 %v849
    %v1015 = vunpack.c.h.b16 %v849
    %v1016 = vunpack.c.l.b16 %v850
    %v1017 = vunpack.c.h.b16 %v850
    %v1018 = vunpack.c.l.b16 %v851
    %v1019 = vunpack.c.h.b16 %v851
    %v1020 = vunpack.c.l.b16 %v852
    %v1021 = vunpack.c.h.b16 %v852
    %v1022 = vunpack.c.l.b16 %v853
    %v1023 = vunpack.c.h.b16 %v853
    %v1024 = vunpack.c.l.b16 %v854
    %v1025 = vunpack.c.h.b16 %v854
    %v1026 = vunpack.c.l.b16 %v855
    %v1027 = vunpack.c.h.b16 %v855
    %v1028 = vunpack.c.l.b16 %v856
    %v1029 = vunpack.c.h.b16 %v856
    %v1030 = vunpack.c.l.b16 %v857
    %v1031 = vunpack.c.h.b16 %v857
    %v1032 = vunpack.c.l.b16 %v858
    %v1033 = vunpack.c.h.b16 %v858
    %v1034 = vunpack.c.l.b16 %v859
    %v1035 = vunpack.c.h.b16 %v859
    %v1036 = vpack.c.b16 %v946, %v940
    %v1037 = vpack.c.b16 %v947, %v941
    %v1038 = vpack.c.b16 %v948, %v942
    %v1039 = vpack.c.b16 %v949, %v943
    %v1040 = vpack.c.b16 %v950, %v944
    %v1041 = vpack.c.b16 %v951, %v945
    %v1042 = vpack.c.b16 %v958, %v952
    %v1043 = vpack.c.b16 %v959, %v953
    %v1044 = vpack.c.b16 %v960, %v954
    %v1045 = vpack.c.b16 %v961, %v955
    %v1046 = vpack.c.b16 %v962, %v956
    %v1047 = vpack.c.b16 %v963, %v957
    %v1048 = vpack.c.b16 %v970, %v964
    %v1049 = vpack.c.b16 %v971, %v965
    %v1050 = vpack.c.b16 %v972, %v966
    %v1051 = vpack.c.b16 %v973, %v967
    %v1052 = vpack.c.b16 %v974, %v968
    %v1053 = vpack.c.b16 %v975, %v969
    %v1054 = vpack.c.b16 %v982, %v976
    %v1055 = vpack.c.b16 %v983, %v977
    %v1056 = vpack.c.b16 %v984, %v978
    %v1057 = vpack.c.b16 %v985, %v979
    %v1058 = vpack.c.b16 %v986, %v980
    %v1059 = vpack.c.b16 %v987, %v981
    %v1060 = vpack.c.b16 %v994, %v988
    %v1061 = vpack.c.b16 %v995, %v989
    %v1062 = vpack.c.b16 %v996, %v990
    %v1063 = vpack.c.b16 %v997, %v991
    %v1064 = vpack.c.b16 %v998, %v992
    %v1065 = vpack.c.b16 %v999, %v993
    %v1066 = vpack.c.b16 %v1006, %v1000
    %v1067 = vpack.c.b16 %v1007, %v1001
    %v1068 = vpack.c.b16 %v1008, %v1002
    %v1069 = vpack.c.b16 %v1009, %v1003
    %v1070 = vpack.c.b16 %v1010, %v1004
    %v1071 = vpack.c.b16 %v1011, %v1005
    %v1072 = vpack.c.b16 %v1018, %v1012
    %v1073 = vpack.c.b16 %v1019, %v1013
    %v1074 = vpack.c.b16 %v1020, %v1014
    %v1075 = vpack.c.b16 %v1021, %v1015
    %v1076 = vpack.c.b16 %v1022, %v1016
    %v1077 = vpack.c.b16 %v1023, %v1017
    %v1078 = vpack.c.b16 %v1030, %v1024
    %v1079 = vpack.c.b16 %v1031, %v1025
    %v1080 = vpack.c.b16 %v1032, %v1026
    %v1081 = vpack.c.b16 %v1033, %v1027
    %v1082 = vpack.c.b16 %v1034, %v1028
    %v1083 = vpack.c.b16 %v1035, %v1029
    %1132 = vmatprep.subr.bf16.mxu0 %v1037
    %1133 = vmatpush1.bf16.msra.mxu0 %v1036
    %1134 = vmatprep.subr.bf16.mxu0 %v1043
    %1135 = vmatpush1.bf16.msra.mxu0 %v1042
    %1136 = vmatprep.subr.bf16.mxu0 %v1049
    %1137 = vmatpush1.bf16.msra.mxu0 %v1048
    %1138 = vmatprep.subr.bf16.mxu0 %v1055
    %1139 = vmatpush1.bf16.msra.mxu0 %v1054
    %1140 = vmatprep.subr.bf16.mxu0 %v1061
    %1141 = vmatpush1.bf16.msra.mxu0 %v1060
    %1142 = vmatprep.subr.bf16.mxu0 %v1067
    %1143 = vmatpush1.bf16.msra.mxu0 %v1066
    %1144 = vmatprep.subr.bf16.mxu0 %v1073
    %1145 = vmatpush1.bf16.msra.mxu0 %v1072
    %1146 = vmatprep.subr.bf16.mxu0 %v1079
    %1147 = vmatpush1.bf16.msra.mxu0 %v1078
    %1148 = vmatprep.subr.bf16.mxu0 0
    %1149 = vmatpush1.bf16.msra.mxu0 0
    %1150 = vmatprep.subr.bf16.mxu0 0
    %1151 = vmatpush1.bf16.msra.mxu0 0
    %1152 = vmatprep.subr.bf16.mxu0 0
    %1153 = vmatpush1.bf16.msra.mxu0 0
    %1154 = vmatprep.subr.bf16.mxu0 0
    %1155 = vmatpush1.bf16.msra.mxu0 0
    %1156 = vmatprep.subr.bf16.mxu0 0
    %1157 = vmatpush1.bf16.msra.mxu0 0
    %1158 = vmatprep.subr.bf16.mxu0 0
    %1159 = vmatpush1.bf16.msra.mxu0 0
    %1160 = vmatprep.subr.bf16.mxu0 0
    %1161 = vmatpush1.bf16.msra.mxu0 0
    %1162 = vmatprep.subr.bf16.mxu0 0
    %1163 = vmatpush1.bf16.msra.mxu0 0
    %1164 = vmatprep.mubr.bf16.mxu0 0
    %1165 = vmatmul.mubr.bf16.gmra.mrb[0].mxu0 %v811
    %v1166 = vpop.f32.mrb[0].mxu0
    %v1167 = vadd.f32 %v865, %v1166
    %v1168 = vpop.f32.mrb[0].mxu0
    %v1169 = vadd.f32 %v869, %v1168
    %v1170 = vpop.f32.mrb[0].mxu0
    %v1171 = vpop.f32.mrb[0].mxu0
    %1172 = vdwg.mxu0
    %1173 = vmatprep.subr.bf16.mxu0 %v1039
    %1174 = vmatpush1.bf16.msra.mxu0 %v1038
    %1175 = vmatprep.subr.bf16.mxu0 %v1045
    %1176 = vmatpush1.bf16.msra.mxu0 %v1044
    %1177 = vmatprep.subr.bf16.mxu0 %v1051
    %1178 = vmatpush1.bf16.msra.mxu0 %v1050
    %1179 = vmatprep.subr.bf16.mxu0 %v1057
    %1180 = vmatpush1.bf16.msra.mxu0 %v1056
    %1181 = vmatprep.subr.bf16.mxu0 %v1063
    %1182 = vmatpush1.bf16.msra.mxu0 %v1062
    %1183 = vmatprep.subr.bf16.mxu0 %v1069
    %1184 = vmatpush1.bf16.msra.mxu0 %v1068
    %1185 = vmatprep.subr.bf16.mxu0 %v1075
    %1186 = vmatpush1.bf16.msra.mxu0 %v1074
    %1187 = vmatprep.subr.bf16.mxu0 %v1081
    %1188 = vmatpush1.bf16.msra.mxu0 %v1080
    %1189 = vmatprep.subr.bf16.mxu0 0
    %1190 = vmatpush1.bf16.msra.mxu0 0
    %1191 = vmatprep.subr.bf16.mxu0 0
    %1192 = vmatpush1.bf16.msra.mxu0 0
    %1193 = vmatprep.subr.bf16.mxu0 0
    %1194 = vmatpush1.bf16.msra.mxu0 0
    %1195 = vmatprep.subr.bf16.mxu0 0
    %1196 = vmatpush1.bf16.msra.mxu0 0
    %1197 = vmatprep.subr.bf16.mxu0 0
    %1198 = vmatpush1.bf16.msra.mxu0 0
    %1199 = vmatprep.subr.bf16.mxu0 0
    %1200 = vmatpush1.bf16.msra.mxu0 0
    %1201 = vmatprep.subr.bf16.mxu0 0
    %1202 = vmatpush1.bf16.msra.mxu0 0
    %1203 = vmatprep.subr.bf16.mxu0 0
    %1204 = vmatpush1.bf16.msra.mxu0 0
    %1205 = vmatprep.mubr.bf16.mxu0 0
    %1206 = vmatmul.mubr.bf16.gmra.mrb[0].mxu0 %v811
    %v1207 = vpop.f32.mrb[0].mxu0
    %v1208 = vadd.f32 %v873, %v1207
    %v1209 = vpop.f32.mrb[0].mxu0
    %v1210 = vadd.f32 %v877, %v1209
    %v1211 = vpop.f32.mrb[0].mxu0
    %v1212 = vpop.f32.mrb[0].mxu0
    %1213 = vdwg.mxu0
    %1214 = vmatprep.subr.bf16.mxu0 %v1041
    %1215 = vmatpush1.bf16.msra.mxu0 %v1040
    %1216 = vmatprep.subr.bf16.mxu0 %v1047
    %1217 = vmatpush1.bf16.msra.mxu0 %v1046
    %1218 = vmatprep.subr.bf16.mxu0 %v1053
    %1219 = vmatpush1.bf16.msra.mxu0 %v1052
    %1220 = vmatprep.subr.bf16.mxu0 %v1059
    %1221 = vmatpush1.bf16.msra.mxu0 %v1058
    %1222 = vmatprep.subr.bf16.mxu0 %v1065
    %1223 = vmatpush1.bf16.msra.mxu0 %v1064
    %1224 = vmatprep.subr.bf16.mxu0 %v1071
    %1225 = vmatpush1.bf16.msra.mxu0 %v1070
    %1226 = vmatprep.subr.bf16.mxu0 %v1077
    %1227 = vmatpush1.bf16.msra.mxu0 %v1076
    %1228 = vmatprep.subr.bf16.mxu0 %v1083
    %1229 = vmatpush1.bf16.msra.mxu0 %v1082
    %1230 = vmatprep.subr.bf16.mxu0 0
    %1231 = vmatpush1.bf16.msra.mxu0 0
    %1232 = vmatprep.subr.bf16.mxu0 0
    %1233 = vmatpush1.bf16.msra.mxu0 0
    %1234 = vmatprep.subr.bf16.mxu0 0
    %1235 = vmatpush1.bf16.msra.mxu0 0
    %1236 = vmatprep.subr.bf16.mxu0 0
    %1237 = vmatpush1.bf16.msra.mxu0 0
    %1238 = vmatprep.subr.bf16.mxu0 0
    %1239 = vmatpush1.bf16.msra.mxu0 0
    %1240 = vmatprep.subr.bf16.mxu0 0
    %1241 = vmatpush1.bf16.msra.mxu0 0
    %1242 = vmatprep.subr.bf16.mxu0 0
    %1243 = vmatpush1.bf16.msra.mxu0 0
    %1244 = vmatprep.subr.bf16.mxu0 0
    %1245 = vmatpush1.bf16.msra.mxu0 0
    %1246 = vmatprep.mubr.bf16.mxu0 0
    %1247 = vmatmul.mubr.bf16.gmra.mrb[0].mxu0 %v811
    %v1248 = vpop.f32.mrb[0].mxu0
    %v1249 = vadd.f32 %v881, %v1248
    %v1250 = vpop.f32.mrb[0].mxu0
    %v1251 = vadd.f32 %v885, %v1250
    %v1252 = vpop.f32.mrb[0].mxu0
    %v1253 = vpop.f32.mrb[0].mxu0
    %1254 = vdwg.mxu0
    %v1255 = vmax.f32 %v1167, 0.0
    %v1256 = vmax.f32 %v1169, 0.0
    %v1257 = vmax.f32 %v1208, 0.0
    %v1258 = vmax.f32 %v1210, 0.0
    %v1259 = vmax.f32 %v1249, 0.0
    %v1260 = vmax.f32 %v1251, 0.0
    %1261 = vst [vmem:[%s7] sm:$0xff] %v1255
    %1262 = vst [vmem:[%s7 + $0x8] sm:$0xff] %v1256
    %1263 = vst [vmem:[%s7 + $0x10] sm:$0xff] %v1257
    %1264 = vst [vmem:[%s7 + $0x18] sm:$0xff] %v1258
    %1265 = vst [vmem:[%s7 + $0x20] sm:$0xff] %v1259
    %1266 = vst [vmem:[%s7 + $0x28] sm:$0xff] %v1260
    // Predicated region
    $region38: #{_forward_impl.1} parent=1 // pred_check
      _
    $region39: #{_forward_impl.1} parent=1 // pred_check_branch
      %1268 = sbr.rel (0) target = $region41
    $region40: #{_forward_impl.1} parent=1 // pred_region
      _
    $region41: #{_forward_impl.1} parent=1 // pred_fallthru
      _
    // Predicated region
    $region42: #{_forward_impl.1} parent=1 // pred_check
      _
    $region43: #{_forward_impl.1} parent=1 // pred_check_branch
      %1270 = sbr.rel (0) target = $region45
    $region44: #{_forward_impl.1} parent=1 // pred_region
      _
    $region45: #{_forward_impl.1} parent=1 // pred_fallthru
      _
    %1271 = vsyncpa [#allocation3], 1
    %1272 = vsyncpa [#allocation5], 1

</llo_original>
